<compile_context>
chip_gen: v5e
topology: v5e:2x2
jax: 0.10.0
libtpu: 0.0.40
codegen_flags: <defaults>
</compile_context>

<pallas_src>
import jax
import jax.numpy as jnp
from jax.experimental import pallas as pl
from jax.experimental.pallas import tpu as pltpu

EPS = 1e-5      # PyTorch BatchNorm default eps
LANE = 128      # pad all channel / feature dims to a full lane width


def _pad2d(w, rows, cols):
    out = jnp.zeros((rows, cols), jnp.float32)
    return out.at[: w.shape[0], : w.shape[1]].set(w)


def _im2col_pad_bf16(x_nchw, k_pad):
    """(M, C, H, W) f32 -> (M*H*W, k_pad) bf16 3x3/s1/p1 patches.

    Column order is tap-major, channel-minor: col = (dy*3+dx)*C + ci, matching
    the conv-weight layout produced in __init__.  Extra K columns are zero.
    """
    m, c, h, w = x_nchw.shape
    xp = jnp.pad(x_nchw, ((0, 0), (0, 0), (1, 1), (1, 1)))
    taps = [xp[:, :, dy:dy + h, dx:dx + w] for dy in range(3) for dx in range(3)]
    patches = jnp.stack(taps, axis=1)                    # (M, 9, C, H, W)
    patches = jnp.transpose(patches, (0, 3, 4, 1, 2))    # (M, H, W, 9, C)
    patches = patches.reshape(m * h * w, 9 * c)
    patches = jnp.pad(patches, ((0, 0), (0, k_pad - 9 * c)))
    return patches.astype(jnp.bfloat16)


# --------------------------------------------------------------------------
# Fully fused kernel: conv1 + BN2d + ReLU + GAP + projector + BarlowTwins loss
# --------------------------------------------------------------------------
def _make_fused_kernel(n, hw, cp, d_real, batch_size, lambd):
    inv_nhw = 1.0 / float(n * hw)
    inv_n = 1.0 / float(n)
    inv_bs = 1.0 / float(batch_size)   # PyTorch divides by args.batch_size

    def kernel(xcol_ref, wc_ref, bnp_ref, wp_ref, loss_ref):
        bnp = bnp_ref[...]                                   # (6, cp) f32

        # ---- conv1 3x3/s1/p1: ONE lane-dense matmul, K padded to 128 -------
        acc = jnp.dot(xcol_ref[...], wc_ref[...],
                      preferred_element_type=jnp.float32)    # (2*n*hw, cp) f32

        # ---- BatchNorm2d (per-view training stats, single pass) + ReLU -----
        a3 = acc.reshape(2, n * hw, cp)
        mu = jnp.sum(a3, axis=1, keepdims=True) * inv_nhw
        var = jnp.sum(a3 * a3, axis=1, keepdims=True) * inv_nhw - mu * mu
        y = bnp[0:1] * (a3 - mu) * jax.lax.rsqrt(var + EPS) + bnp[1:2]
        y = jnp.maximum(y, 0.0)

        # ---- global average pool over H*W -----------------------------------
        feat = jnp.mean(y.reshape(2 * n, hw, cp), axis=1)    # (2n, cp)

        # ---- projector: Linear+BN1d+ReLU, Linear+BN1d+ReLU, Linear ---------
        def bn_relu(h, g, b):                                # per-view stats
            h3 = h.reshape(2, n, cp)
            m = jnp.sum(h3, axis=1, keepdims=True) * inv_n
            v = jnp.sum(h3 * h3, axis=1, keepdims=True) * inv_n - m * m
            out = g * (h3 - m) * jax.lax.rsqrt(v + EPS) + b
            return jnp.maximum(out, 0.0).reshape(2 * n, cp)

        h = jnp.dot(feat.astype(jnp.bfloat16), wp_ref[0],
                    preferred_element_type=jnp.float32)
        h = bn_relu(h, bnp[2:3], bnp[3:4])
        h = jnp.dot(h.astype(jnp.bfloat16), wp_ref[1],
                    preferred_element_type=jnp.float32)
        h = bn_relu(h, bnp[4:5], bnp[5:6])
        z = jnp.dot(h.astype(jnp.bfloat16), wp_ref[2],
                    preferred_element_type=jnp.float32)      # (2n, cp)

        # ---- loss: c = bn(z1).T @ bn(z2) / batch_size (BN1d affine=False) --
        z3 = z.reshape(2, n, cp)
        zm = jnp.sum(z3, axis=1, keepdims=True) * inv_n
        zv = jnp.sum(z3 * z3, axis=1, keepdims=True) * inv_n - zm * zm
        zn = (z3 - zm) * jax.lax.rsqrt(zv + EPS)             # padded lanes stay 0
        a = zn[0]                                            # (n, cp) f32
        b = zn[1]
        c = jax.lax.dot_general(a, b, (((0,), (0,)), ((), ())),
                                preferred_element_type=jnp.float32) * inv_bs
        # TODO(synk): torch.distributed.all_reduce(c) skipped — single device.

        # diag(c) extracted from c itself so on/off-diag share one source.
        row = jax.lax.broadcasted_iota(jnp.int32, c.shape, 0)
        col = jax.lax.broadcasted_iota(jnp.int32, c.shape, 1)
        diag = jnp.sum(jnp.where(row == col, c, 0.0), axis=0, keepdims=True)
        lane = jax.lax.broadcasted_iota(jnp.int32, diag.shape, 1)
        real = lane < d_real                 # exclude zero-padded channels
        on_diag = jnp.sum(jnp.where(real, (diag - 1.0) ** 2, 0.0))
        off_diag = jnp.sum(c * c) - jnp.sum(diag * diag)
        loss_ref[0, 0] = on_diag + jnp.float32(lambd) * off_diag

    return kernel


def barlowtwins_fused(xcol, wc, bnp, wp, *, n, hw, cp, d_real,
                      batch_size, lambd):
    kernel = _make_fused_kernel(n, hw, cp, d_real, batch_size, lambd)

    flops = (2 * (2 * n * hw) * cp * cp          # conv matmul
             + 3 * 2 * (2 * n) * cp * cp         # projector matmuls
             + 2 * n * cp * cp)                  # loss correlation
    bytes_accessed = (xcol.size * 2 + wc.size * 2 + wp.size * 2
                      + bnp.size * 4 + 4)

    out = pl.pallas_call(
        kernel,
        out_shape=jax.ShapeDtypeStruct((1, 1), jnp.float32),
        in_specs=[pl.BlockSpec(memory_space=pltpu.MemorySpace.VMEM)] * 4,
        out_specs=pl.BlockSpec(memory_space=pltpu.MemorySpace.SMEM),
        compiler_params=pltpu.CompilerParams(
            vmem_limit_bytes=32 * 1024 * 1024),
        cost_estimate=pl.CostEstimate(flops=int(flops),
                                      transcendentals=1024,
                                      bytes_accessed=int(bytes_accessed)),
    )(xcol, wc, bnp, wp)
    return out[0, 0]


# --------------------------------------------------------------------------
# Model wrapper (deterministic synthetic parameters)
# --------------------------------------------------------------------------
class BarlowTwinsPallas:
    def __init__(self, key, in_ch=10, conv_out=16, proj_sizes=(16, 32, 32, 32),
                 batch_size=8, lambd=0.0051):
        assert proj_sizes[0] == conv_out
        assert conv_out <= LANE and max(proj_sizes) <= LANE
        assert 9 * in_ch <= LANE, "im2col K must fit one 128-lane tile"
        self.batch_size = batch_size
        self.lambd = lambd
        self.d_out = proj_sizes[-1]
        ks = jax.random.split(key, 4)

        # backbone conv1 ('B10': in_ch -> conv_out, 3x3, stride 1, pad 1, no bias)
        # layout hoisted to init: (Cout,Cin,kh,kw) -> (9*Cin, Cout), K/N padded
        # to 128 so the conv is one lane-dense matmul against the im2col input.
        w_conv = 0.1 * jax.random.normal(ks[0], (conv_out, in_ch, 3, 3),
                                         jnp.float32)
        wtaps = jnp.transpose(w_conv, (2, 3, 1, 0)).reshape(9 * in_ch, conv_out)
        self.wc = _pad2d(wtaps, LANE, LANE).astype(jnp.bfloat16)

        # projector weights (no bias), stacked into one (3, LANE, LANE) array.
        d0, d1, d2, d3 = proj_sizes
        w1 = jax.random.normal(ks[1], (d0, d1), jnp.float32) / jnp.sqrt(d0)
        w2 = jax.random.normal(ks[2], (d1, d2), jnp.float32) / jnp.sqrt(d1)
        w3 = jax.random.normal(ks[3], (d2, d3), jnp.float32) / jnp.sqrt(d2)
        self.wp = jnp.stack([_pad2d(w1, LANE, LANE),
                             _pad2d(w2, LANE, LANE),
                             _pad2d(w3, LANE, LANE)]).astype(jnp.bfloat16)

        # packed BN params: rows = [gamma_conv, beta_conv, g1, b1, g2, b2]
        ones = jnp.ones((1, LANE), jnp.float32)
        zeros = jnp.zeros((1, LANE), jnp.float32)
        self.bnp = jnp.concatenate([ones, zeros, ones, zeros, ones, zeros],
                                   axis=0)

    def forward(self, y1, y2):
        n, c, h, w = y1.shape
        # wrapper prep (layout plumbing only): stack views, 3x3 im2col, bf16.
        ys = jnp.concatenate([y1, y2], axis=0)               # (2N, C, H, W)
        xcol = _im2col_pad_bf16(ys, LANE)                    # (2N*H*W, 128) bf16
        return barlowtwins_fused(xcol, self.wc, self.bnp, self.wp,
                                 n=n, hw=h * w, cp=LANE, d_real=self.d_out,
                                 batch_size=self.batch_size, lambd=self.lambd)


if __name__ == "__main__":
    key = jax.random.PRNGKey(0)
    k_params, k1, k2 = jax.random.split(key, 3)

    N, C, H, W = 8, 10, 8, 8          # batch, bands ('B10' -> 10 channels), spatial
    model = BarlowTwinsPallas(k_params, in_ch=C, conv_out=16,
                              proj_sizes=(16, 32, 32, 32),
                              batch_size=N, lambd=0.0051)

    # PyTorch-convention NCHW inputs (two augmented views)
    y1 = jax.random.normal(k1, (N, C, H, W), jnp.float32)
    y2 = jax.random.normal(k2, (N, C, H, W), jnp.float32)

    loss = model.forward(y1, y2)
    jax.block_until_ready(loss)
    assert loss.shape == () and bool(jnp.isfinite(loss))
    print("KERNEL_OK")
</pallas_src>

<mosaic_0001>
module attributes {stable_mosaic.version = 11 : i64} {
  func.func @kernel(%arg0: memref<1024x128xbf16, #tpu.memory_space<vmem>>, %arg1: memref<128x128xbf16, #tpu.memory_space<vmem>>, %arg2: memref<6x128xf32, #tpu.memory_space<vmem>>, %arg3: memref<3x128x128xbf16, #tpu.memory_space<vmem>>, %arg4: memref<1x1xf32, #tpu.memory_space<smem>>) attributes {dimension_semantics = [], scalar_prefetch = 0 : i64, scratch_operands = 0 : i64, tpu.core_type = #tpu.core_type<tc>} {
    %c0 = arith.constant 0 : index
    %c0_0 = arith.constant 0 : index
    %0 = vector.load %arg2[%c0, %c0_0] : memref<6x128xf32, #tpu.memory_space<vmem>>, vector<6x128xf32>
    %c0_1 = arith.constant 0 : index
    %c0_2 = arith.constant 0 : index
    %1 = vector.load %arg0[%c0_1, %c0_2] : memref<1024x128xbf16, #tpu.memory_space<vmem>>, vector<1024x128xbf16>
    %c0_3 = arith.constant 0 : index
    %c0_4 = arith.constant 0 : index
    %2 = vector.load %arg1[%c0_3, %c0_4] : memref<128x128xbf16, #tpu.memory_space<vmem>>, vector<128x128xbf16>
    %cst = arith.constant dense<0.000000e+00> : vector<1024x128xf32>
    %3 = tpu.matmul %1, %2, %cst {dimension_numbers = #tpu.dot_dimension_numbers<[1], [0], [0], [1], [0, 0, 1, 1], [], []>} : vector<1024x128xbf16>, vector<128x128xbf16>, vector<1024x128xf32> -> vector<1024x128xf32>
    %4 = vector.shape_cast %3 : vector<1024x128xf32> to vector<2x512x128xf32>
    %cst_5 = arith.constant dense<0.000000e+00> : vector<2x128xf32>
    %5 = vector.multi_reduction <add>, %4, %cst_5 [1] : vector<2x512x128xf32> to vector<2x128xf32>
    %6 = vector.shape_cast %5 : vector<2x128xf32> to vector<2x1x128xf32>
    %cst_6 = arith.constant 0.001953125 : f32
    %7 = vector.broadcast %cst_6 : f32 to vector<2x1x128xf32>
    %8 = arith.mulf %6, %7 : vector<2x1x128xf32>
    %9 = arith.mulf %4, %4 : vector<2x512x128xf32>
    %cst_7 = arith.constant dense<0.000000e+00> : vector<2x128xf32>
    %10 = vector.multi_reduction <add>, %9, %cst_7 [1] : vector<2x512x128xf32> to vector<2x128xf32>
    %11 = vector.shape_cast %10 : vector<2x128xf32> to vector<2x1x128xf32>
    %cst_8 = arith.constant 0.001953125 : f32
    %12 = vector.broadcast %cst_8 : f32 to vector<2x1x128xf32>
    %13 = arith.mulf %11, %12 : vector<2x1x128xf32>
    %14 = arith.mulf %8, %8 : vector<2x1x128xf32>
    %15 = arith.subf %13, %14 : vector<2x1x128xf32>
    %16 = vector.extract_strided_slice %0 {offsets = [0, 0], sizes = [1, 128], strides = [1, 1]} : vector<6x128xf32> to vector<1x128xf32>
    %17 = vector.broadcast %8 : vector<2x1x128xf32> to vector<2x512x128xf32>
    %18 = arith.subf %4, %17 : vector<2x512x128xf32>
    %19 = vector.shape_cast %16 : vector<1x128xf32> to vector<1x1x128xf32>
    %20 = vector.broadcast %19 : vector<1x1x128xf32> to vector<2x512x128xf32>
    %21 = arith.mulf %20, %18 : vector<2x512x128xf32>
    %cst_9 = arith.constant 9.99999974E-6 : f32
    %22 = vector.broadcast %cst_9 : f32 to vector<2x1x128xf32>
    %23 = arith.addf %15, %22 : vector<2x1x128xf32>
    %24 = math.rsqrt %23 : vector<2x1x128xf32>
    %25 = vector.broadcast %24 : vector<2x1x128xf32> to vector<2x512x128xf32>
    %26 = arith.mulf %21, %25 : vector<2x512x128xf32>
    %27 = vector.extract_strided_slice %0 {offsets = [1, 0], sizes = [1, 128], strides = [1, 1]} : vector<6x128xf32> to vector<1x128xf32>
    %28 = vector.shape_cast %27 : vector<1x128xf32> to vector<1x1x128xf32>
    %29 = vector.broadcast %28 : vector<1x1x128xf32> to vector<2x512x128xf32>
    %30 = arith.addf %26, %29 : vector<2x512x128xf32>
    %cst_10 = arith.constant 0.000000e+00 : f32
    %31 = vector.broadcast %cst_10 : f32 to vector<2x512x128xf32>
    %32 = arith.maximumf %30, %31 : vector<2x512x128xf32>
    %33 = vector.shape_cast %32 : vector<2x512x128xf32> to vector<16x64x128xf32>
    %cst_11 = arith.constant dense<0.000000e+00> : vector<16x128xf32>
    %34 = vector.multi_reduction <add>, %33, %cst_11 [1] : vector<16x64x128xf32> to vector<16x128xf32>
    %cst_12 = arith.constant 6.400000e+01 : f32
    %35 = vector.broadcast %cst_12 : f32 to vector<16x128xf32>
    %36 = arith.divf %34, %35 : vector<16x128xf32>
    %37 = arith.truncf %36 : vector<16x128xf32> to vector<16x128xbf16>
    %c0_13 = arith.constant 0 : index
    %c0_14 = arith.constant 0 : index
    %c0_15 = arith.constant 0 : index
    %38 = vector.load %arg3[%c0_13, %c0_14, %c0_15] : memref<3x128x128xbf16, #tpu.memory_space<vmem>>, vector<1x128x128xbf16>
    %39 = vector.shape_cast %38 : vector<1x128x128xbf16> to vector<128x128xbf16>
    %cst_16 = arith.constant dense<0.000000e+00> : vector<16x128xf32>
    %40 = tpu.matmul %37, %39, %cst_16 {dimension_numbers = #tpu.dot_dimension_numbers<[1], [0], [0], [1], [0, 0, 1, 1], [], []>} : vector<16x128xbf16>, vector<128x128xbf16>, vector<16x128xf32> -> vector<16x128xf32>
    %41 = vector.extract_strided_slice %0 {offsets = [2, 0], sizes = [1, 128], strides = [1, 1]} : vector<6x128xf32> to vector<1x128xf32>
    %42 = vector.extract_strided_slice %0 {offsets = [3, 0], sizes = [1, 128], strides = [1, 1]} : vector<6x128xf32> to vector<1x128xf32>
    %43 = vector.shape_cast %40 : vector<16x128xf32> to vector<2x8x128xf32>
    %cst_17 = arith.constant dense<0.000000e+00> : vector<2x128xf32>
    %44 = vector.multi_reduction <add>, %43, %cst_17 [1] : vector<2x8x128xf32> to vector<2x128xf32>
    %45 = vector.shape_cast %44 : vector<2x128xf32> to vector<2x1x128xf32>
    %cst_18 = arith.constant 1.250000e-01 : f32
    %46 = vector.broadcast %cst_18 : f32 to vector<2x1x128xf32>
    %47 = arith.mulf %45, %46 : vector<2x1x128xf32>
    %48 = arith.mulf %43, %43 : vector<2x8x128xf32>
    %cst_19 = arith.constant dense<0.000000e+00> : vector<2x128xf32>
    %49 = vector.multi_reduction <add>, %48, %cst_19 [1] : vector<2x8x128xf32> to vector<2x128xf32>
    %50 = vector.shape_cast %49 : vector<2x128xf32> to vector<2x1x128xf32>
    %cst_20 = arith.constant 1.250000e-01 : f32
    %51 = vector.broadcast %cst_20 : f32 to vector<2x1x128xf32>
    %52 = arith.mulf %50, %51 : vector<2x1x128xf32>
    %53 = arith.mulf %47, %47 : vector<2x1x128xf32>
    %54 = arith.subf %52, %53 : vector<2x1x128xf32>
    %55 = vector.broadcast %47 : vector<2x1x128xf32> to vector<2x8x128xf32>
    %56 = arith.subf %43, %55 : vector<2x8x128xf32>
    %57 = vector.shape_cast %41 : vector<1x128xf32> to vector<1x1x128xf32>
    %58 = vector.broadcast %57 : vector<1x1x128xf32> to vector<2x8x128xf32>
    %59 = arith.mulf %58, %56 : vector<2x8x128xf32>
    %cst_21 = arith.constant 9.99999974E-6 : f32
    %60 = vector.broadcast %cst_21 : f32 to vector<2x1x128xf32>
    %61 = arith.addf %54, %60 : vector<2x1x128xf32>
    %62 = math.rsqrt %61 : vector<2x1x128xf32>
    %63 = vector.broadcast %62 : vector<2x1x128xf32> to vector<2x8x128xf32>
    %64 = arith.mulf %59, %63 : vector<2x8x128xf32>
    %65 = vector.shape_cast %42 : vector<1x128xf32> to vector<1x1x128xf32>
    %66 = vector.broadcast %65 : vector<1x1x128xf32> to vector<2x8x128xf32>
    %67 = arith.addf %64, %66 : vector<2x8x128xf32>
    %cst_22 = arith.constant 0.000000e+00 : f32
    %68 = vector.broadcast %cst_22 : f32 to vector<2x8x128xf32>
    %69 = arith.maximumf %67, %68 : vector<2x8x128xf32>
    %70 = vector.shape_cast %69 : vector<2x8x128xf32> to vector<16x128xf32>
    %71 = arith.truncf %70 : vector<16x128xf32> to vector<16x128xbf16>
    %c1 = arith.constant 1 : index
    %c0_23 = arith.constant 0 : index
    %c0_24 = arith.constant 0 : index
    %72 = vector.load %arg3[%c1, %c0_23, %c0_24] : memref<3x128x128xbf16, #tpu.memory_space<vmem>>, vector<1x128x128xbf16>
    %73 = vector.shape_cast %72 : vector<1x128x128xbf16> to vector<128x128xbf16>
    %cst_25 = arith.constant dense<0.000000e+00> : vector<16x128xf32>
    %74 = tpu.matmul %71, %73, %cst_25 {dimension_numbers = #tpu.dot_dimension_numbers<[1], [0], [0], [1], [0, 0, 1, 1], [], []>} : vector<16x128xbf16>, vector<128x128xbf16>, vector<16x128xf32> -> vector<16x128xf32>
    %75 = vector.extract_strided_slice %0 {offsets = [4, 0], sizes = [1, 128], strides = [1, 1]} : vector<6x128xf32> to vector<1x128xf32>
    %76 = vector.extract_strided_slice %0 {offsets = [5, 0], sizes = [1, 128], strides = [1, 1]} : vector<6x128xf32> to vector<1x128xf32>
    %77 = vector.shape_cast %74 : vector<16x128xf32> to vector<2x8x128xf32>
    %cst_26 = arith.constant dense<0.000000e+00> : vector<2x128xf32>
    %78 = vector.multi_reduction <add>, %77, %cst_26 [1] : vector<2x8x128xf32> to vector<2x128xf32>
    %79 = vector.shape_cast %78 : vector<2x128xf32> to vector<2x1x128xf32>
    %cst_27 = arith.constant 1.250000e-01 : f32
    %80 = vector.broadcast %cst_27 : f32 to vector<2x1x128xf32>
    %81 = arith.mulf %79, %80 : vector<2x1x128xf32>
    %82 = arith.mulf %77, %77 : vector<2x8x128xf32>
    %cst_28 = arith.constant dense<0.000000e+00> : vector<2x128xf32>
    %83 = vector.multi_reduction <add>, %82, %cst_28 [1] : vector<2x8x128xf32> to vector<2x128xf32>
    %84 = vector.shape_cast %83 : vector<2x128xf32> to vector<2x1x128xf32>
    %cst_29 = arith.constant 1.250000e-01 : f32
    %85 = vector.broadcast %cst_29 : f32 to vector<2x1x128xf32>
    %86 = arith.mulf %84, %85 : vector<2x1x128xf32>
    %87 = arith.mulf %81, %81 : vector<2x1x128xf32>
    %88 = arith.subf %86, %87 : vector<2x1x128xf32>
    %89 = vector.broadcast %81 : vector<2x1x128xf32> to vector<2x8x128xf32>
    %90 = arith.subf %77, %89 : vector<2x8x128xf32>
    %91 = vector.shape_cast %75 : vector<1x128xf32> to vector<1x1x128xf32>
    %92 = vector.broadcast %91 : vector<1x1x128xf32> to vector<2x8x128xf32>
    %93 = arith.mulf %92, %90 : vector<2x8x128xf32>
    %cst_30 = arith.constant 9.99999974E-6 : f32
    %94 = vector.broadcast %cst_30 : f32 to vector<2x1x128xf32>
    %95 = arith.addf %88, %94 : vector<2x1x128xf32>
    %96 = math.rsqrt %95 : vector<2x1x128xf32>
    %97 = vector.broadcast %96 : vector<2x1x128xf32> to vector<2x8x128xf32>
    %98 = arith.mulf %93, %97 : vector<2x8x128xf32>
    %99 = vector.shape_cast %76 : vector<1x128xf32> to vector<1x1x128xf32>
    %100 = vector.broadcast %99 : vector<1x1x128xf32> to vector<2x8x128xf32>
    %101 = arith.addf %98, %100 : vector<2x8x128xf32>
    %cst_31 = arith.constant 0.000000e+00 : f32
    %102 = vector.broadcast %cst_31 : f32 to vector<2x8x128xf32>
    %103 = arith.maximumf %101, %102 : vector<2x8x128xf32>
    %104 = vector.shape_cast %103 : vector<2x8x128xf32> to vector<16x128xf32>
    %105 = arith.truncf %104 : vector<16x128xf32> to vector<16x128xbf16>
    %c2 = arith.constant 2 : index
    %c0_32 = arith.constant 0 : index
    %c0_33 = arith.constant 0 : index
    %106 = vector.load %arg3[%c2, %c0_32, %c0_33] : memref<3x128x128xbf16, #tpu.memory_space<vmem>>, vector<1x128x128xbf16>
    %107 = vector.shape_cast %106 : vector<1x128x128xbf16> to vector<128x128xbf16>
    %cst_34 = arith.constant dense<0.000000e+00> : vector<16x128xf32>
    %108 = tpu.matmul %105, %107, %cst_34 {dimension_numbers = #tpu.dot_dimension_numbers<[1], [0], [0], [1], [0, 0, 1, 1], [], []>} : vector<16x128xbf16>, vector<128x128xbf16>, vector<16x128xf32> -> vector<16x128xf32>
    %109 = vector.shape_cast %108 : vector<16x128xf32> to vector<2x8x128xf32>
    %cst_35 = arith.constant dense<0.000000e+00> : vector<2x128xf32>
    %110 = vector.multi_reduction <add>, %109, %cst_35 [1] : vector<2x8x128xf32> to vector<2x128xf32>
    %111 = vector.shape_cast %110 : vector<2x128xf32> to vector<2x1x128xf32>
    %cst_36 = arith.constant 1.250000e-01 : f32
    %112 = vector.broadcast %cst_36 : f32 to vector<2x1x128xf32>
    %113 = arith.mulf %111, %112 : vector<2x1x128xf32>
    %114 = arith.mulf %109, %109 : vector<2x8x128xf32>
    %cst_37 = arith.constant dense<0.000000e+00> : vector<2x128xf32>
    %115 = vector.multi_reduction <add>, %114, %cst_37 [1] : vector<2x8x128xf32> to vector<2x128xf32>
    %116 = vector.shape_cast %115 : vector<2x128xf32> to vector<2x1x128xf32>
    %cst_38 = arith.constant 1.250000e-01 : f32
    %117 = vector.broadcast %cst_38 : f32 to vector<2x1x128xf32>
    %118 = arith.mulf %116, %117 : vector<2x1x128xf32>
    %119 = arith.mulf %113, %113 : vector<2x1x128xf32>
    %120 = arith.subf %118, %119 : vector<2x1x128xf32>
    %121 = vector.broadcast %113 : vector<2x1x128xf32> to vector<2x8x128xf32>
    %122 = arith.subf %109, %121 : vector<2x8x128xf32>
    %cst_39 = arith.constant 9.99999974E-6 : f32
    %123 = vector.broadcast %cst_39 : f32 to vector<2x1x128xf32>
    %124 = arith.addf %120, %123 : vector<2x1x128xf32>
    %125 = math.rsqrt %124 : vector<2x1x128xf32>
    %126 = vector.broadcast %125 : vector<2x1x128xf32> to vector<2x8x128xf32>
    %127 = arith.mulf %122, %126 : vector<2x8x128xf32>
    %128 = vector.extract_strided_slice %127 {offsets = [0, 0, 0], sizes = [1, 8, 128], strides = [1, 1, 1]} : vector<2x8x128xf32> to vector<1x8x128xf32>
    %129 = vector.shape_cast %128 : vector<1x8x128xf32> to vector<8x128xf32>
    %130 = vector.extract_strided_slice %127 {offsets = [1, 0, 0], sizes = [1, 8, 128], strides = [1, 1, 1]} : vector<2x8x128xf32> to vector<1x8x128xf32>
    %131 = vector.shape_cast %130 : vector<1x8x128xf32> to vector<8x128xf32>
    %cst_40 = arith.constant dense<0.000000e+00> : vector<128x128xf32>
    %132 = tpu.matmul %129, %131, %cst_40 {dimension_numbers = #tpu.dot_dimension_numbers<[0], [0], [1], [1], [0, 1, 1, 1], [], []>} : vector<8x128xf32>, vector<8x128xf32>, vector<128x128xf32> -> vector<128x128xf32>
    %cst_41 = arith.constant 1.250000e-01 : f32
    %133 = vector.broadcast %cst_41 : f32 to vector<128x128xf32>
    %134 = arith.mulf %132, %133 : vector<128x128xf32>
    %135 = tpu.iota {dimensions = array<i32: 0>} : vector<128x128xi32>
    %136 = tpu.iota {dimensions = array<i32: 1>} : vector<128x128xi32>
    %137 = arith.cmpi eq, %135, %136 : vector<128x128xi32>
    %cst_42 = arith.constant 0.000000e+00 : f32
    %138 = vector.broadcast %cst_42 : f32 to vector<128x128xf32>
    %139 = arith.select %137, %134, %138 : vector<128x128xi1>, vector<128x128xf32>
    %cst_43 = arith.constant dense<0.000000e+00> : vector<128xf32>
    %140 = vector.multi_reduction <add>, %139, %cst_43 [0] : vector<128x128xf32> to vector<128xf32>
    %141 = vector.shape_cast %140 : vector<128xf32> to vector<1x128xf32>
    %142 = tpu.iota {dimensions = array<i32: 1>} : vector<1x128xi32>
    %c32_i32 = arith.constant 32 : i32
    %143 = vector.broadcast %c32_i32 : i32 to vector<1x128xi32>
    %144 = arith.cmpi slt, %142, %143 : vector<1x128xi32>
    %cst_44 = arith.constant 1.000000e+00 : f32
    %145 = vector.broadcast %cst_44 : f32 to vector<1x128xf32>
    %146 = arith.subf %141, %145 : vector<1x128xf32>
    %147 = arith.mulf %146, %146 : vector<1x128xf32>
    %cst_45 = arith.constant 0.000000e+00 : f32
    %148 = vector.broadcast %cst_45 : f32 to vector<1x128xf32>
    %149 = arith.select %144, %147, %148 : vector<1x128xi1>, vector<1x128xf32>
    %150 = vector.shape_cast %149 : vector<1x128xf32> to vector<1x1x128xf32>
    %cst_46 = arith.constant dense<0.000000e+00> : vector<1xf32>
    %151 = vector.multi_reduction <add>, %150, %cst_46 [1, 2] : vector<1x1x128xf32> to vector<1xf32>
    %152 = vector.shape_cast %151 : vector<1xf32> to vector<1x1x1xf32>
    %153 = vector.extract %152[0, 0, 0] : f32 from vector<1x1x1xf32>
    %154 = arith.mulf %134, %134 : vector<128x128xf32>
    %155 = vector.shape_cast %154 : vector<128x128xf32> to vector<1x128x128xf32>
    %cst_47 = arith.constant dense<0.000000e+00> : vector<1xf32>
    %156 = vector.multi_reduction <add>, %155, %cst_47 [1, 2] : vector<1x128x128xf32> to vector<1xf32>
    %157 = vector.shape_cast %156 : vector<1xf32> to vector<1x1x1xf32>
    %158 = vector.extract %157[0, 0, 0] : f32 from vector<1x1x1xf32>
    %159 = arith.mulf %141, %141 : vector<1x128xf32>
    %160 = vector.shape_cast %159 : vector<1x128xf32> to vector<1x1x128xf32>
    %cst_48 = arith.constant dense<0.000000e+00> : vector<1xf32>
    %161 = vector.multi_reduction <add>, %160, %cst_48 [1, 2] : vector<1x1x128xf32> to vector<1xf32>
    %162 = vector.shape_cast %161 : vector<1xf32> to vector<1x1x1xf32>
    %163 = vector.extract %162[0, 0, 0] : f32 from vector<1x1x1xf32>
    %164 = arith.subf %158, %163 : f32
    %cst_49 = arith.constant 5.100000e-03 : f32
    %165 = arith.mulf %cst_49, %164 : f32
    %166 = arith.addf %153, %165 : f32
    %c0_50 = arith.constant 0 : index
    %c0_51 = arith.constant 0 : index
    %167 = memref.load %arg4[%c0_50, %c0_51] : memref<1x1xf32, #tpu.memory_space<smem>>
    memref.store %166, %arg4[%c0_50, %c0_51] : memref<1x1xf32, #tpu.memory_space<smem>>
    return
  }
}

</mosaic_0001>

<llo_original>
// kernel: tpu_custom_call.1
$region0: #{tpu_custom_call.1}
  #allocation0 [shape = 'u32[]', space=smem, size = 0x4, offset = 0x4, fixed_abs, tag = 'smem constant byte address 0x4 - core index']
  #allocation1 [shape = 'u32[72,128]{1,0:T(1,128)}', space=vmem, size = 0x9000, scoped, tag = 'internal scratch']
  %s0 = inlined_call_operand.hbm [shape: bf16[1024,128], index: 0, kind: input, shape index: {}]
  %s1 = inlined_call_operand.hbm [shape: bf16[128,128], index: 1, kind: input, shape index: {}]
  %s2 = inlined_call_operand.hbm [shape: f32[6,128], index: 2, kind: input, shape index: {}]
  %s3 = inlined_call_operand.hbm [shape: bf16[3,128,128], index: 3, kind: input, shape index: {}]
  %s4 = inlined_call_operand.hbm [shape: f32[1,1], index: 4, kind: output, shape index: {}]
  %s5 = sld [smem:[#allocation0]]
  $region42: #{tpu_custom_call.1} parent=0
    _
  %s7 = ssub.s32 1, %s5
  %s8 = scalar_select 0, %s7, %s5
  $region1: #{tpu_custom_call.1} parent=0
    #allocation2 [shape = 'u8[262144]{0}', space=vmem, size = 0x40000, scoped, tag = 'input window, operand 0, single buffered']
    #allocation3 [shape = 's32[1]{0}', space=sflag, size = 0x4, scoped, tag = 'scoped memory for tpu_custom_call.1']
    #allocation4 [shape = 's32[1]{0}', space=sflag, size = 0x4, scoped, tag = 'scoped memory for tpu_custom_call.1']
    #allocation5 [shape = 'u8[32768]{0}', space=vmem, size = 0x8000, scoped, tag = 'input window, operand 1, single buffered']
    #allocation6 [shape = 's32[1]{0}', space=sflag, size = 0x4, scoped, tag = 'scoped memory for tpu_custom_call.1']
    #allocation7 [shape = 'u8[4096]{0}', space=vmem, size = 0x1000, scoped, tag = 'input window, operand 2, single buffered']
    #allocation8 [shape = 'u8[98304]{0}', space=vmem, size = 0x18000, scoped, tag = 'input window, operand 3, single buffered']
    #allocation9 [shape = 's32[1]{0}', space=sflag, size = 0x4, scoped, tag = 'scoped memory for tpu_custom_call.1']
    #allocation10 [shape = 'u8[512]{0}', space=smem, size = 0x200, scoped, tag = 'output window, operand 0, single buffered']
    %9 = vsyncpa [#allocation3], 0
    %10 = vsyncpa [#allocation6], 0
    %11 = vsyncpa [#allocation9], 0
    %12 = vsyncpa [#allocation4], 0
    // Predicated region
    $region2: #{tpu_custom_call.1} parent=1 // pred_check
      _
    $region3: #{tpu_custom_call.1} parent=1 // pred_check_branch
      %14 = sbr.rel (0) target = $region5
    $region4: #{tpu_custom_call.1} parent=1 // pred_region
      %16 = vsyncadd [#allocation3], 0
      %s17 = sshll.u32 %s0, 4
      %s18 = int_to_ptr.hbm [resolvable:$true] %s17
      %s19 = sshll.u32 [#allocation2], 4
      %s20 = int_to_ptr.vmem [resolvable:$true] %s19
      %25 = dma.hbm_to_vmem [thread:$0]  %s18, 8192, %s20, [#allocation3], 64, 64, 4
    $region5: #{tpu_custom_call.1} parent=1 // pred_fallthru
      _
    // Predicated region
    $region6: #{tpu_custom_call.1} parent=1 // pred_check
      _
    $region7: #{tpu_custom_call.1} parent=1 // pred_check_branch
      %27 = sbr.rel (0) target = $region9
    $region8: #{tpu_custom_call.1} parent=1 // pred_region
      %29 = vsyncadd [#allocation6], 0
      %s30 = sshll.u32 %s1, 4
      %s31 = int_to_ptr.hbm [resolvable:$true] %s30
      %s32 = sshll.u32 [#allocation5], 4
      %s33 = int_to_ptr.vmem [resolvable:$true] %s32
      %38 = dma.hbm_to_vmem [thread:$0]  %s31, 1024, %s33, [#allocation6], 64, 64, 4
    $region9: #{tpu_custom_call.1} parent=1 // pred_fallthru
      _
    // Predicated region
    $region10: #{tpu_custom_call.1} parent=1 // pred_check
      _
    $region11: #{tpu_custom_call.1} parent=1 // pred_check_branch
      %40 = sbr.rel (0) target = $region13
    $region12: #{tpu_custom_call.1} parent=1 // pred_region
      %42 = vsyncadd [#allocation6], 0
      %s44 = sshll.u32 %s2, 4
      %s45 = int_to_ptr.hbm [resolvable:$true] %s44
      %s46 = sshll.u32 [#allocation7], 4
      %s47 = int_to_ptr.vmem [resolvable:$true] %s46
      %49 = dma.hbm_to_vmem [thread:$0]  %s45, 128, %s47, [#allocation6]
    $region13: #{tpu_custom_call.1} parent=1 // pred_fallthru
      _
    // Predicated region
    $region14: #{tpu_custom_call.1} parent=1 // pred_check
      _
    $region15: #{tpu_custom_call.1} parent=1 // pred_check_branch
      %51 = sbr.rel (0) target = $region17
    $region16: #{tpu_custom_call.1} parent=1 // pred_region
      %53 = vsyncadd [#allocation9], 0
      %s54 = sshll.u32 %s3, 4
      %s55 = int_to_ptr.hbm [resolvable:$true] %s54
      %s56 = sshll.u32 [#allocation8], 4
      %s57 = int_to_ptr.vmem [resolvable:$true] %s56
      %62 = dma.hbm_to_vmem [thread:$0]  %s55, 3072, %s57, [#allocation9], 64, 64, 4
    $region17: #{tpu_custom_call.1} parent=1 // pred_fallthru
      _
    // Predicated region
    $region18: #{tpu_custom_call.1} parent=1 // pred_check
      _
    $region19: #{tpu_custom_call.1} parent=1 // pred_check_branch
      %64 = sbr.rel (0) target = $region21
    $region20: #{tpu_custom_call.1} parent=1 // pred_region
      %66 = dma.done [#allocation3], 8192
    $region21: #{tpu_custom_call.1} parent=1 // pred_fallthru
      _
    // Predicated region
    $region22: #{tpu_custom_call.1} parent=1 // pred_check
      _
    $region23: #{tpu_custom_call.1} parent=1 // pred_check_branch
      %68 = sbr.rel (0) target = $region25
    $region24: #{tpu_custom_call.1} parent=1 // pred_region
      %70 = dma.done [#allocation6], 1024
    $region25: #{tpu_custom_call.1} parent=1 // pred_fallthru
      _
    // Predicated region
    $region26: #{tpu_custom_call.1} parent=1 // pred_check
      _
    $region27: #{tpu_custom_call.1} parent=1 // pred_check_branch
      %72 = sbr.rel (0) target = $region29
    $region28: #{tpu_custom_call.1} parent=1 // pred_region
      %74 = dma.done [#allocation6], 128
    $region29: #{tpu_custom_call.1} parent=1 // pred_fallthru
      _
    // Predicated region
    $region30: #{tpu_custom_call.1} parent=1 // pred_check
      _
    $region31: #{tpu_custom_call.1} parent=1 // pred_check_branch
      %76 = sbr.rel (0) target = $region33
    $region32: #{tpu_custom_call.1} parent=1 // pred_region
      %78 = dma.done [#allocation9], 3072
    $region33: #{tpu_custom_call.1} parent=1 // pred_fallthru
      _
    %v79 = vld [vmem:[#allocation7] sm:$0x3f]
    %v80 = vld [vmem:[#allocation2] sm:$0xf]
    %v81 = vld [vmem:[#allocation2 + $0x4] sm:$0xf]
    %v82 = vld [vmem:[#allocation2 + $0x8] sm:$0xf]
    %v83 = vld [vmem:[#allocation2 + $0xc] sm:$0xf]
    %v84 = vld [vmem:[#allocation2 + $0x10] sm:$0xf]
    %v85 = vld [vmem:[#allocation2 + $0x14] sm:$0xf]
    %v86 = vld [vmem:[#allocation2 + $0x18] sm:$0xf]
    %v87 = vld [vmem:[#allocation2 + $0x1c] sm:$0xf]
    %v88 = vld [vmem:[#allocation2 + $0x20] sm:$0xf]
    %v89 = vld [vmem:[#allocation2 + $0x24] sm:$0xf]
    %v90 = vld [vmem:[#allocation2 + $0x28] sm:$0xf]
    %v91 = vld [vmem:[#allocation2 + $0x2c] sm:$0xf]
    %v92 = vld [vmem:[#allocation2 + $0x30] sm:$0xf]
    %v93 = vld [vmem:[#allocation2 + $0x34] sm:$0xf]
    %v94 = vld [vmem:[#allocation2 + $0x38] sm:$0xf]
    %v95 = vld [vmem:[#allocation2 + $0x3c] sm:$0xf]
    %v96 = vld [vmem:[#allocation2 + $0x40] sm:$0xf]
    %v97 = vld [vmem:[#allocation2 + $0x44] sm:$0xf]
    %v98 = vld [vmem:[#allocation2 + $0x48] sm:$0xf]
    %v99 = vld [vmem:[#allocation2 + $0x4c] sm:$0xf]
    %v100 = vld [vmem:[#allocation2 + $0x50] sm:$0xf]
    %v101 = vld [vmem:[#allocation2 + $0x54] sm:$0xf]
    %v102 = vld [vmem:[#allocation2 + $0x58] sm:$0xf]
    %v103 = vld [vmem:[#allocation2 + $0x5c] sm:$0xf]
    %v104 = vld [vmem:[#allocation2 + $0x60] sm:$0xf]
    %v105 = vld [vmem:[#allocation2 + $0x64] sm:$0xf]
    %v106 = vld [vmem:[#allocation2 + $0x68] sm:$0xf]
    %v107 = vld [vmem:[#allocation2 + $0x6c] sm:$0xf]
    %v108 = vld [vmem:[#allocation2 + $0x70] sm:$0xf]
    %v109 = vld [vmem:[#allocation2 + $0x74] sm:$0xf]
    %v110 = vld [vmem:[#allocation2 + $0x78] sm:$0xf]
    %v111 = vld [vmem:[#allocation2 + $0x7c] sm:$0xf]
    %v112 = vld [vmem:[#allocation2 + $0x80] sm:$0xf]
    %v113 = vld [vmem:[#allocation2 + $0x84] sm:$0xf]
    %v114 = vld [vmem:[#allocation2 + $0x88] sm:$0xf]
    %v115 = vld [vmem:[#allocation2 + $0x8c] sm:$0xf]
    %v116 = vld [vmem:[#allocation2 + $0x90] sm:$0xf]
    %v117 = vld [vmem:[#allocation2 + $0x94] sm:$0xf]
    %v118 = vld [vmem:[#allocation2 + $0x98] sm:$0xf]
    %v119 = vld [vmem:[#allocation2 + $0x9c] sm:$0xf]
    %v120 = vld [vmem:[#allocation2 + $0xa0] sm:$0xf]
    %v121 = vld [vmem:[#allocation2 + $0xa4] sm:$0xf]
    %v122 = vld [vmem:[#allocation2 + $0xa8] sm:$0xf]
    %v123 = vld [vmem:[#allocation2 + $0xac] sm:$0xf]
    %v124 = vld [vmem:[#allocation2 + $0xb0] sm:$0xf]
    %v125 = vld [vmem:[#allocation2 + $0xb4] sm:$0xf]
    %v126 = vld [vmem:[#allocation2 + $0xb8] sm:$0xf]
    %v127 = vld [vmem:[#allocation2 + $0xbc] sm:$0xf]
    %v128 = vld [vmem:[#allocation2 + $0xc0] sm:$0xf]
    %v129 = vld [vmem:[#allocation2 + $0xc4] sm:$0xf]
    %v130 = vld [vmem:[#allocation2 + $0xc8] sm:$0xf]
    %v131 = vld [vmem:[#allocation2 + $0xcc] sm:$0xf]
    %v132 = vld [vmem:[#allocation2 + $0xd0] sm:$0xf]
    %v133 = vld [vmem:[#allocation2 + $0xd4] sm:$0xf]
    %v134 = vld [vmem:[#allocation2 + $0xd8] sm:$0xf]
    %v135 = vld [vmem:[#allocation2 + $0xdc] sm:$0xf]
    %v136 = vld [vmem:[#allocation2 + $0xe0] sm:$0xf]
    %v137 = vld [vmem:[#allocation2 + $0xe4] sm:$0xf]
    %v138 = vld [vmem:[#allocation2 + $0xe8] sm:$0xf]
    %v139 = vld [vmem:[#allocation2 + $0xec] sm:$0xf]
    %v140 = vld [vmem:[#allocation2 + $0xf0] sm:$0xf]
    %v141 = vld [vmem:[#allocation2 + $0xf4] sm:$0xf]
    %v142 = vld [vmem:[#allocation2 + $0xf8] sm:$0xf]
    %v143 = vld [vmem:[#allocation2 + $0xfc] sm:$0xf]
    %v144 = vld [vmem:[#allocation2 + $0x100] sm:$0xf]
    %v145 = vld [vmem:[#allocation2 + $0x104] sm:$0xf]
    %v146 = vld [vmem:[#allocation2 + $0x108] sm:$0xf]
    %v147 = vld [vmem:[#allocation2 + $0x10c] sm:$0xf]
    %v148 = vld [vmem:[#allocation2 + $0x110] sm:$0xf]
    %v149 = vld [vmem:[#allocation2 + $0x114] sm:$0xf]
    %v150 = vld [vmem:[#allocation2 + $0x118] sm:$0xf]
    %v151 = vld [vmem:[#allocation2 + $0x11c] sm:$0xf]
    %v152 = vld [vmem:[#allocation2 + $0x120] sm:$0xf]
    %v153 = vld [vmem:[#allocation2 + $0x124] sm:$0xf]
    %v154 = vld [vmem:[#allocation2 + $0x128] sm:$0xf]
    %v155 = vld [vmem:[#allocation2 + $0x12c] sm:$0xf]
    %v156 = vld [vmem:[#allocation2 + $0x130] sm:$0xf]
    %v157 = vld [vmem:[#allocation2 + $0x134] sm:$0xf]
    %v158 = vld [vmem:[#allocation2 + $0x138] sm:$0xf]
    %v159 = vld [vmem:[#allocation2 + $0x13c] sm:$0xf]
    %v160 = vld [vmem:[#allocation2 + $0x140] sm:$0xf]
    %v161 = vld [vmem:[#allocation2 + $0x144] sm:$0xf]
    %v162 = vld [vmem:[#allocation2 + $0x148] sm:$0xf]
    %v163 = vld [vmem:[#allocation2 + $0x14c] sm:$0xf]
    %v164 = vld [vmem:[#allocation2 + $0x150] sm:$0xf]
    %v165 = vld [vmem:[#allocation2 + $0x154] sm:$0xf]
    %v166 = vld [vmem:[#allocation2 + $0x158] sm:$0xf]
    %v167 = vld [vmem:[#allocation2 + $0x15c] sm:$0xf]
    %v168 = vld [vmem:[#allocation2 + $0x160] sm:$0xf]
    %v169 = vld [vmem:[#allocation2 + $0x164] sm:$0xf]
    %v170 = vld [vmem:[#allocation2 + $0x168] sm:$0xf]
    %v171 = vld [vmem:[#allocation2 + $0x16c] sm:$0xf]
    %v172 = vld [vmem:[#allocation2 + $0x170] sm:$0xf]
    %v173 = vld [vmem:[#allocation2 + $0x174] sm:$0xf]
    %v174 = vld [vmem:[#allocation2 + $0x178] sm:$0xf]
    %v175 = vld [vmem:[#allocation2 + $0x17c] sm:$0xf]
    %v176 = vld [vmem:[#allocation2 + $0x180] sm:$0xf]
    %v177 = vld [vmem:[#allocation2 + $0x184] sm:$0xf]
    %v178 = vld [vmem:[#allocation2 + $0x188] sm:$0xf]
    %v179 = vld [vmem:[#allocation2 + $0x18c] sm:$0xf]
    %v180 = vld [vmem:[#allocation2 + $0x190] sm:$0xf]
    %v181 = vld [vmem:[#allocation2 + $0x194] sm:$0xf]
    %v182 = vld [vmem:[#allocation2 + $0x198] sm:$0xf]
    %v183 = vld [vmem:[#allocation2 + $0x19c] sm:$0xf]
    %v184 = vld [vmem:[#allocation2 + $0x1a0] sm:$0xf]
    %v185 = vld [vmem:[#allocation2 + $0x1a4] sm:$0xf]
    %v186 = vld [vmem:[#allocation2 + $0x1a8] sm:$0xf]
    %v187 = vld [vmem:[#allocation2 + $0x1ac] sm:$0xf]
    %v188 = vld [vmem:[#allocation2 + $0x1b0] sm:$0xf]
    %v189 = vld [vmem:[#allocation2 + $0x1b4] sm:$0xf]
    %v190 = vld [vmem:[#allocation2 + $0x1b8] sm:$0xf]
    %v191 = vld [vmem:[#allocation2 + $0x1bc] sm:$0xf]
    %v192 = vld [vmem:[#allocation2 + $0x1c0] sm:$0xf]
    %v193 = vld [vmem:[#allocation2 + $0x1c4] sm:$0xf]
    %v194 = vld [vmem:[#allocation2 + $0x1c8] sm:$0xf]
    %v195 = vld [vmem:[#allocation2 + $0x1cc] sm:$0xf]
    %v196 = vld [vmem:[#allocation2 + $0x1d0] sm:$0xf]
    %v197 = vld [vmem:[#allocation2 + $0x1d4] sm:$0xf]
    %v198 = vld [vmem:[#allocation2 + $0x1d8] sm:$0xf]
    %v199 = vld [vmem:[#allocation2 + $0x1dc] sm:$0xf]
    %v200 = vld [vmem:[#allocation2 + $0x1e0] sm:$0xf]
    %v201 = vld [vmem:[#allocation2 + $0x1e4] sm:$0xf]
    %v202 = vld [vmem:[#allocation2 + $0x1e8] sm:$0xf]
    %v203 = vld [vmem:[#allocation2 + $0x1ec] sm:$0xf]
    %v204 = vld [vmem:[#allocation2 + $0x1f0] sm:$0xf]
    %v205 = vld [vmem:[#allocation2 + $0x1f4] sm:$0xf]
    %v206 = vld [vmem:[#allocation2 + $0x1f8] sm:$0xf]
    %v207 = vld [vmem:[#allocation2 + $0x1fc] sm:$0xf]
    %v208 = vld [vmem:[#allocation5] sm:$0xf]
    %v209 = vld [vmem:[#allocation5 + $0x4] sm:$0xf]
    %v210 = vld [vmem:[#allocation5 + $0x8] sm:$0xf]
    %v211 = vld [vmem:[#allocation5 + $0xc] sm:$0xf]
    %v212 = vld [vmem:[#allocation5 + $0x10] sm:$0xf]
    %v213 = vld [vmem:[#allocation5 + $0x14] sm:$0xf]
    %v214 = vld [vmem:[#allocation5 + $0x18] sm:$0xf]
    %v215 = vld [vmem:[#allocation5 + $0x1c] sm:$0xf]
    %v216 = vld [vmem:[#allocation5 + $0x20] sm:$0xf]
    %v217 = vld [vmem:[#allocation5 + $0x24] sm:$0xf]
    %v218 = vld [vmem:[#allocation5 + $0x28] sm:$0xf]
    %v219 = vld [vmem:[#allocation5 + $0x2c] sm:$0xf]
    %v220 = vld [vmem:[#allocation5 + $0x30] sm:$0xf]
    %v221 = vld [vmem:[#allocation5 + $0x34] sm:$0xf]
    %v222 = vld [vmem:[#allocation5 + $0x38] sm:$0xf]
    %v223 = vld [vmem:[#allocation5 + $0x3c] sm:$0xf]
    %v352 = vunpack.c.l.b16 %v80
    %v353 = vunpack.c.l.b16 %v81
    %v354 = vunpack.c.l.b16 %v82
    %v355 = vunpack.c.l.b16 %v83
    %v356 = vunpack.c.l.b16 %v84
    %v357 = vunpack.c.l.b16 %v85
    %v358 = vunpack.c.l.b16 %v86
    %v359 = vunpack.c.l.b16 %v87
    %v360 = vunpack.c.l.b16 %v88
    %v361 = vunpack.c.l.b16 %v89
    %v362 = vunpack.c.l.b16 %v90
    %v363 = vunpack.c.l.b16 %v91
    %v364 = vunpack.c.l.b16 %v92
    %v365 = vunpack.c.l.b16 %v93
    %v366 = vunpack.c.l.b16 %v94
    %v367 = vunpack.c.l.b16 %v95
    %v368 = vunpack.c.l.b16 %v96
    %v369 = vunpack.c.l.b16 %v97
    %v370 = vunpack.c.l.b16 %v98
    %v371 = vunpack.c.l.b16 %v99
    %v372 = vunpack.c.l.b16 %v100
    %v373 = vunpack.c.l.b16 %v101
    %v374 = vunpack.c.l.b16 %v102
    %v375 = vunpack.c.l.b16 %v103
    %v376 = vunpack.c.l.b16 %v104
    %v377 = vunpack.c.l.b16 %v105
    %v378 = vunpack.c.l.b16 %v106
    %v379 = vunpack.c.l.b16 %v107
    %v380 = vunpack.c.l.b16 %v108
    %v381 = vunpack.c.l.b16 %v109
    %v382 = vunpack.c.l.b16 %v110
    %v383 = vunpack.c.l.b16 %v111
    %v384 = vunpack.c.l.b16 %v112
    %v385 = vunpack.c.l.b16 %v113
    %v386 = vunpack.c.l.b16 %v114
    %v387 = vunpack.c.l.b16 %v115
    %v388 = vunpack.c.l.b16 %v116
    %v389 = vunpack.c.l.b16 %v117
    %v390 = vunpack.c.l.b16 %v118
    %v391 = vunpack.c.l.b16 %v119
    %v392 = vunpack.c.l.b16 %v120
    %v393 = vunpack.c.l.b16 %v121
    %v394 = vunpack.c.l.b16 %v122
    %v395 = vunpack.c.l.b16 %v123
    %v396 = vunpack.c.l.b16 %v124
    %v397 = vunpack.c.l.b16 %v125
    %v398 = vunpack.c.l.b16 %v126
    %v399 = vunpack.c.l.b16 %v127
    %v400 = vunpack.c.l.b16 %v128
    %v401 = vunpack.c.l.b16 %v129
    %v402 = vunpack.c.l.b16 %v130
    %v403 = vunpack.c.l.b16 %v131
    %v404 = vunpack.c.l.b16 %v132
    %v405 = vunpack.c.l.b16 %v133
    %v406 = vunpack.c.l.b16 %v134
    %v407 = vunpack.c.l.b16 %v135
    %v408 = vunpack.c.l.b16 %v136
    %v409 = vunpack.c.l.b16 %v137
    %v410 = vunpack.c.l.b16 %v138
    %v411 = vunpack.c.l.b16 %v139
    %v412 = vunpack.c.l.b16 %v140
    %v413 = vunpack.c.l.b16 %v141
    %v414 = vunpack.c.l.b16 %v142
    %v415 = vunpack.c.l.b16 %v143
    %v416 = vunpack.c.l.b16 %v144
    %v417 = vunpack.c.l.b16 %v145
    %v418 = vunpack.c.l.b16 %v146
    %v419 = vunpack.c.l.b16 %v147
    %v420 = vunpack.c.l.b16 %v148
    %v421 = vunpack.c.l.b16 %v149
    %v422 = vunpack.c.l.b16 %v150
    %v423 = vunpack.c.l.b16 %v151
    %v424 = vunpack.c.l.b16 %v152
    %v425 = vunpack.c.l.b16 %v153
    %v426 = vunpack.c.l.b16 %v154
    %v427 = vunpack.c.l.b16 %v155
    %v428 = vunpack.c.l.b16 %v156
    %v429 = vunpack.c.l.b16 %v157
    %v430 = vunpack.c.l.b16 %v158
    %v431 = vunpack.c.l.b16 %v159
    %v432 = vunpack.c.l.b16 %v160
    %v433 = vunpack.c.l.b16 %v161
    %v434 = vunpack.c.l.b16 %v162
    %v435 = vunpack.c.l.b16 %v163
    %v436 = vunpack.c.l.b16 %v164
    %v437 = vunpack.c.l.b16 %v165
    %v438 = vunpack.c.l.b16 %v166
    %v439 = vunpack.c.l.b16 %v167
    %v440 = vunpack.c.l.b16 %v168
    %v441 = vunpack.c.l.b16 %v169
    %v442 = vunpack.c.l.b16 %v170
    %v443 = vunpack.c.l.b16 %v171
    %v444 = vunpack.c.l.b16 %v172
    %v445 = vunpack.c.l.b16 %v173
    %v446 = vunpack.c.l.b16 %v174
    %v447 = vunpack.c.l.b16 %v175
    %v448 = vunpack.c.l.b16 %v176
    %v449 = vunpack.c.l.b16 %v177
    %v450 = vunpack.c.l.b16 %v178
    %v451 = vunpack.c.l.b16 %v179
    %v452 = vunpack.c.l.b16 %v180
    %v453 = vunpack.c.l.b16 %v181
    %v454 = vunpack.c.l.b16 %v182
    %v455 = vunpack.c.l.b16 %v183
    %v456 = vunpack.c.l.b16 %v184
    %v457 = vunpack.c.l.b16 %v185
    %v458 = vunpack.c.l.b16 %v186
    %v459 = vunpack.c.l.b16 %v187
    %v460 = vunpack.c.l.b16 %v188
    %v461 = vunpack.c.l.b16 %v189
    %v462 = vunpack.c.l.b16 %v190
    %v463 = vunpack.c.l.b16 %v191
    %v464 = vunpack.c.l.b16 %v192
    %v465 = vunpack.c.l.b16 %v193
    %v466 = vunpack.c.l.b16 %v194
    %v467 = vunpack.c.l.b16 %v195
    %v468 = vunpack.c.l.b16 %v196
    %v469 = vunpack.c.l.b16 %v197
    %v470 = vunpack.c.l.b16 %v198
    %v471 = vunpack.c.l.b16 %v199
    %v472 = vunpack.c.l.b16 %v200
    %v473 = vunpack.c.l.b16 %v201
    %v474 = vunpack.c.l.b16 %v202
    %v475 = vunpack.c.l.b16 %v203
    %v476 = vunpack.c.l.b16 %v204
    %v477 = vunpack.c.l.b16 %v205
    %v478 = vunpack.c.l.b16 %v206
    %v479 = vunpack.c.l.b16 %v207
    %v480 = vpack.c.b16 %v353, %v352
    %v481 = vpack.c.b16 %v355, %v354
    %v482 = vpack.c.b16 %v357, %v356
    %v483 = vpack.c.b16 %v359, %v358
    %v484 = vpack.c.b16 %v361, %v360
    %v485 = vpack.c.b16 %v363, %v362
    %v486 = vpack.c.b16 %v365, %v364
    %v487 = vpack.c.b16 %v367, %v366
    %v488 = vpack.c.b16 %v369, %v368
    %v489 = vpack.c.b16 %v371, %v370
    %v490 = vpack.c.b16 %v373, %v372
    %v491 = vpack.c.b16 %v375, %v374
    %v492 = vpack.c.b16 %v377, %v376
    %v493 = vpack.c.b16 %v379, %v378
    %v494 = vpack.c.b16 %v381, %v380
    %v495 = vpack.c.b16 %v383, %v382
    %v496 = vpack.c.b16 %v385, %v384
    %v497 = vpack.c.b16 %v387, %v386
    %v498 = vpack.c.b16 %v389, %v388
    %v499 = vpack.c.b16 %v391, %v390
    %v500 = vpack.c.b16 %v393, %v392
    %v501 = vpack.c.b16 %v395, %v394
    %v502 = vpack.c.b16 %v397, %v396
    %v503 = vpack.c.b16 %v399, %v398
    %v504 = vpack.c.b16 %v401, %v400
    %v505 = vpack.c.b16 %v403, %v402
    %v506 = vpack.c.b16 %v405, %v404
    %v507 = vpack.c.b16 %v407, %v406
    %v508 = vpack.c.b16 %v409, %v408
    %v509 = vpack.c.b16 %v411, %v410
    %v510 = vpack.c.b16 %v413, %v412
    %v511 = vpack.c.b16 %v415, %v414
    %v512 = vpack.c.b16 %v417, %v416
    %v513 = vpack.c.b16 %v419, %v418
    %v514 = vpack.c.b16 %v421, %v420
    %v515 = vpack.c.b16 %v423, %v422
    %v516 = vpack.c.b16 %v425, %v424
    %v517 = vpack.c.b16 %v427, %v426
    %v518 = vpack.c.b16 %v429, %v428
    %v519 = vpack.c.b16 %v431, %v430
    %v520 = vpack.c.b16 %v433, %v432
    %v521 = vpack.c.b16 %v435, %v434
    %v522 = vpack.c.b16 %v437, %v436
    %v523 = vpack.c.b16 %v439, %v438
    %v524 = vpack.c.b16 %v441, %v440
    %v525 = vpack.c.b16 %v443, %v442
    %v526 = vpack.c.b16 %v445, %v444
    %v527 = vpack.c.b16 %v447, %v446
    %v528 = vpack.c.b16 %v449, %v448
    %v529 = vpack.c.b16 %v451, %v450
    %v530 = vpack.c.b16 %v453, %v452
    %v531 = vpack.c.b16 %v455, %v454
    %v532 = vpack.c.b16 %v457, %v456
    %v533 = vpack.c.b16 %v459, %v458
    %v534 = vpack.c.b16 %v461, %v460
    %v535 = vpack.c.b16 %v463, %v462
    %v536 = vpack.c.b16 %v465, %v464
    %v537 = vpack.c.b16 %v467, %v466
    %v538 = vpack.c.b16 %v469, %v468
    %v539 = vpack.c.b16 %v471, %v470
    %v540 = vpack.c.b16 %v473, %v472
    %v541 = vpack.c.b16 %v475, %v474
    %v542 = vpack.c.b16 %v477, %v476
    %v543 = vpack.c.b16 %v479, %v478
    %v624 = vunpack.c.l.b16 %v208
    %v625 = vunpack.c.l.b16 %v209
    %v626 = vunpack.c.l.b16 %v210
    %v627 = vunpack.c.l.b16 %v211
    %v628 = vunpack.c.l.b16 %v212
    %v629 = vunpack.c.l.b16 %v213
    %v630 = vunpack.c.l.b16 %v214
    %v631 = vunpack.c.l.b16 %v215
    %v632 = vunpack.c.l.b16 %v216
    %v633 = vunpack.c.l.b16 %v217
    %v634 = vunpack.c.l.b16 %v218
    %v635 = vunpack.c.l.b16 %v219
    %v636 = vunpack.c.l.b16 %v220
    %v637 = vunpack.c.l.b16 %v221
    %v638 = vunpack.c.l.b16 %v222
    %v639 = vunpack.c.l.b16 %v223
    %v640 = vpack.c.b16 %v625, %v624
    %v641 = vpack.c.b16 %v627, %v626
    %v642 = vpack.c.b16 %v629, %v628
    %v643 = vpack.c.b16 %v631, %v630
    %v644 = vpack.c.b16 %v633, %v632
    %v645 = vpack.c.b16 %v635, %v634
    %v646 = vpack.c.b16 %v637, %v636
    %v647 = vpack.c.b16 %v639, %v638
    %656 = vmatpush.bf16.msra.mxu0 %v647
    %657 = vmatpush.bf16.msra.mxu0 %v646
    %658 = vmatpush.bf16.msra.mxu0 %v645
    %659 = vmatpush.bf16.msra.mxu0 %v644
    %660 = vmatpush.bf16.msra.mxu0 %v643
    %661 = vmatpush.bf16.msra.mxu0 %v642
    %662 = vmatpush.bf16.msra.mxu0 %v641
    %663 = vmatpush.bf16.msra.mxu0 %v640
    %664 = vmatmul.bf16.gmra.mxu0 %v480
    %v665 = vpop.f32.mrf.mxu0
    %v666 = vadd.f32 0.0, %v665
    %v667 = vpop.f32.mrf.mxu0
    %v668 = vadd.f32 0.0, %v667
    %669 = vmatmul.bf16.gmra.mxu0 %v481
    %v670 = vpop.f32.mrf.mxu0
    %v671 = vadd.f32 0.0, %v670
    %v672 = vpop.f32.mrf.mxu0
    %v673 = vadd.f32 0.0, %v672
    %674 = vmatmul.bf16.gmra.mxu0 %v482
    %v675 = vpop.f32.mrf.mxu0
    %v676 = vadd.f32 0.0, %v675
    %v677 = vpop.f32.mrf.mxu0
    %v678 = vadd.f32 0.0, %v677
    %679 = vmatmul.bf16.gmra.mxu0 %v483
    %v680 = vpop.f32.mrf.mxu0
    %v681 = vadd.f32 0.0, %v680
    %v682 = vpop.f32.mrf.mxu0
    %v683 = vadd.f32 0.0, %v682
    %684 = vmatmul.bf16.gmra.mxu0 %v484
    %v685 = vpop.f32.mrf.mxu0
    %v686 = vadd.f32 0.0, %v685
    %v687 = vpop.f32.mrf.mxu0
    %v688 = vadd.f32 0.0, %v687
    %689 = vmatmul.bf16.gmra.mxu0 %v485
    %v690 = vpop.f32.mrf.mxu0
    %v691 = vadd.f32 0.0, %v690
    %v692 = vpop.f32.mrf.mxu0
    %v693 = vadd.f32 0.0, %v692
    %694 = vmatmul.bf16.gmra.mxu0 %v486
    %v695 = vpop.f32.mrf.mxu0
    %v696 = vadd.f32 0.0, %v695
    %v697 = vpop.f32.mrf.mxu0
    %v698 = vadd.f32 0.0, %v697
    %699 = vmatmul.bf16.gmra.mxu0 %v487
    %v700 = vpop.f32.mrf.mxu0
    %v701 = vadd.f32 0.0, %v700
    %v702 = vpop.f32.mrf.mxu0
    %v703 = vadd.f32 0.0, %v702
    %704 = vmatmul.bf16.gmra.mxu0 %v488
    %v705 = vpop.f32.mrf.mxu0
    %v706 = vadd.f32 0.0, %v705
    %v707 = vpop.f32.mrf.mxu0
    %v708 = vadd.f32 0.0, %v707
    %709 = vmatmul.bf16.gmra.mxu0 %v489
    %v710 = vpop.f32.mrf.mxu0
    %v711 = vadd.f32 0.0, %v710
    %v712 = vpop.f32.mrf.mxu0
    %v713 = vadd.f32 0.0, %v712
    %714 = vmatmul.bf16.gmra.mxu0 %v490
    %v715 = vpop.f32.mrf.mxu0
    %v716 = vadd.f32 0.0, %v715
    %v717 = vpop.f32.mrf.mxu0
    %v718 = vadd.f32 0.0, %v717
    %719 = vmatmul.bf16.gmra.mxu0 %v491
    %v720 = vpop.f32.mrf.mxu0
    %v721 = vadd.f32 0.0, %v720
    %v722 = vpop.f32.mrf.mxu0
    %v723 = vadd.f32 0.0, %v722
    %724 = vmatmul.bf16.gmra.mxu0 %v492
    %v725 = vpop.f32.mrf.mxu0
    %v726 = vadd.f32 0.0, %v725
    %v727 = vpop.f32.mrf.mxu0
    %v728 = vadd.f32 0.0, %v727
    %729 = vmatmul.bf16.gmra.mxu0 %v493
    %v730 = vpop.f32.mrf.mxu0
    %v731 = vadd.f32 0.0, %v730
    %v732 = vpop.f32.mrf.mxu0
    %v733 = vadd.f32 0.0, %v732
    %734 = vmatmul.bf16.gmra.mxu0 %v494
    %v735 = vpop.f32.mrf.mxu0
    %v736 = vadd.f32 0.0, %v735
    %v737 = vpop.f32.mrf.mxu0
    %v738 = vadd.f32 0.0, %v737
    %739 = vmatmul.bf16.gmra.mxu0 %v495
    %v740 = vpop.f32.mrf.mxu0
    %v741 = vadd.f32 0.0, %v740
    %v742 = vpop.f32.mrf.mxu0
    %v743 = vadd.f32 0.0, %v742
    %744 = vmatmul.bf16.gmra.mxu0 %v496
    %v745 = vpop.f32.mrf.mxu0
    %v746 = vadd.f32 0.0, %v745
    %v747 = vpop.f32.mrf.mxu0
    %v748 = vadd.f32 0.0, %v747
    %749 = vmatmul.bf16.gmra.mxu0 %v497
    %v750 = vpop.f32.mrf.mxu0
    %v751 = vadd.f32 0.0, %v750
    %v752 = vpop.f32.mrf.mxu0
    %v753 = vadd.f32 0.0, %v752
    %754 = vmatmul.bf16.gmra.mxu0 %v498
    %v755 = vpop.f32.mrf.mxu0
    %v756 = vadd.f32 0.0, %v755
    %v757 = vpop.f32.mrf.mxu0
    %v758 = vadd.f32 0.0, %v757
    %759 = vmatmul.bf16.gmra.mxu0 %v499
    %v760 = vpop.f32.mrf.mxu0
    %v761 = vadd.f32 0.0, %v760
    %v762 = vpop.f32.mrf.mxu0
    %v763 = vadd.f32 0.0, %v762
    %764 = vmatmul.bf16.gmra.mxu0 %v500
    %v765 = vpop.f32.mrf.mxu0
    %v766 = vadd.f32 0.0, %v765
    %v767 = vpop.f32.mrf.mxu0
    %v768 = vadd.f32 0.0, %v767
    %769 = vmatmul.bf16.gmra.mxu0 %v501
    %v770 = vpop.f32.mrf.mxu0
    %v771 = vadd.f32 0.0, %v770
    %v772 = vpop.f32.mrf.mxu0
    %v773 = vadd.f32 0.0, %v772
    %774 = vmatmul.bf16.gmra.mxu0 %v502
    %v775 = vpop.f32.mrf.mxu0
    %v776 = vadd.f32 0.0, %v775
    %v777 = vpop.f32.mrf.mxu0
    %v778 = vadd.f32 0.0, %v777
    %779 = vmatmul.bf16.gmra.mxu0 %v503
    %v780 = vpop.f32.mrf.mxu0
    %v781 = vadd.f32 0.0, %v780
    %v782 = vpop.f32.mrf.mxu0
    %v783 = vadd.f32 0.0, %v782
    %784 = vmatmul.bf16.gmra.mxu0 %v504
    %v785 = vpop.f32.mrf.mxu0
    %v786 = vadd.f32 0.0, %v785
    %v787 = vpop.f32.mrf.mxu0
    %v788 = vadd.f32 0.0, %v787
    %789 = vmatmul.bf16.gmra.mxu0 %v505
    %v790 = vpop.f32.mrf.mxu0
    %v791 = vadd.f32 0.0, %v790
    %v792 = vpop.f32.mrf.mxu0
    %v793 = vadd.f32 0.0, %v792
    %794 = vmatmul.bf16.gmra.mxu0 %v506
    %v795 = vpop.f32.mrf.mxu0
    %v796 = vadd.f32 0.0, %v795
    %v797 = vpop.f32.mrf.mxu0
    %v798 = vadd.f32 0.0, %v797
    %799 = vmatmul.bf16.gmra.mxu0 %v507
    %v800 = vpop.f32.mrf.mxu0
    %v801 = vadd.f32 0.0, %v800
    %v802 = vpop.f32.mrf.mxu0
    %v803 = vadd.f32 0.0, %v802
    %804 = vmatmul.bf16.gmra.mxu0 %v508
    %v805 = vpop.f32.mrf.mxu0
    %v806 = vadd.f32 0.0, %v805
    %v807 = vpop.f32.mrf.mxu0
    %v808 = vadd.f32 0.0, %v807
    %809 = vmatmul.bf16.gmra.mxu0 %v509
    %v810 = vpop.f32.mrf.mxu0
    %v811 = vadd.f32 0.0, %v810
    %v812 = vpop.f32.mrf.mxu0
    %v813 = vadd.f32 0.0, %v812
    %814 = vmatmul.bf16.gmra.mxu0 %v510
    %v815 = vpop.f32.mrf.mxu0
    %v816 = vadd.f32 0.0, %v815
    %v817 = vpop.f32.mrf.mxu0
    %v818 = vadd.f32 0.0, %v817
    %819 = vmatmul.bf16.gmra.mxu0 %v511
    %v820 = vpop.f32.mrf.mxu0
    %v821 = vadd.f32 0.0, %v820
    %v822 = vpop.f32.mrf.mxu0
    %v823 = vadd.f32 0.0, %v822
    %824 = vmatmul.bf16.gmra.mxu0 %v512
    %v825 = vpop.f32.mrf.mxu0
    %v826 = vadd.f32 0.0, %v825
    %v827 = vpop.f32.mrf.mxu0
    %v828 = vadd.f32 0.0, %v827
    %829 = vmatmul.bf16.gmra.mxu0 %v513
    %v830 = vpop.f32.mrf.mxu0
    %v831 = vadd.f32 0.0, %v830
    %v832 = vpop.f32.mrf.mxu0
    %v833 = vadd.f32 0.0, %v832
    %834 = vmatmul.bf16.gmra.mxu0 %v514
    %v835 = vpop.f32.mrf.mxu0
    %v836 = vadd.f32 0.0, %v835
    %v837 = vpop.f32.mrf.mxu0
    %v838 = vadd.f32 0.0, %v837
    %839 = vmatmul.bf16.gmra.mxu0 %v515
    %v840 = vpop.f32.mrf.mxu0
    %v841 = vadd.f32 0.0, %v840
    %v842 = vpop.f32.mrf.mxu0
    %v843 = vadd.f32 0.0, %v842
    %844 = vmatmul.bf16.gmra.mxu0 %v516
    %v845 = vpop.f32.mrf.mxu0
    %v846 = vadd.f32 0.0, %v845
    %v847 = vpop.f32.mrf.mxu0
    %v848 = vadd.f32 0.0, %v847
    %849 = vmatmul.bf16.gmra.mxu0 %v517
    %v850 = vpop.f32.mrf.mxu0
    %v851 = vadd.f32 0.0, %v850
    %v852 = vpop.f32.mrf.mxu0
    %v853 = vadd.f32 0.0, %v852
    %854 = vmatmul.bf16.gmra.mxu0 %v518
    %v855 = vpop.f32.mrf.mxu0
    %v856 = vadd.f32 0.0, %v855
    %v857 = vpop.f32.mrf.mxu0
    %v858 = vadd.f32 0.0, %v857
    %859 = vmatmul.bf16.gmra.mxu0 %v519
    %v860 = vpop.f32.mrf.mxu0
    %v861 = vadd.f32 0.0, %v860
    %v862 = vpop.f32.mrf.mxu0
    %v863 = vadd.f32 0.0, %v862
    %864 = vmatmul.bf16.gmra.mxu0 %v520
    %v865 = vpop.f32.mrf.mxu0
    %v866 = vadd.f32 0.0, %v865
    %v867 = vpop.f32.mrf.mxu0
    %v868 = vadd.f32 0.0, %v867
    %869 = vmatmul.bf16.gmra.mxu0 %v521
    %v870 = vpop.f32.mrf.mxu0
    %v871 = vadd.f32 0.0, %v870
    %v872 = vpop.f32.mrf.mxu0
    %v873 = vadd.f32 0.0, %v872
    %874 = vmatmul.bf16.gmra.mxu0 %v522
    %v875 = vpop.f32.mrf.mxu0
    %v876 = vadd.f32 0.0, %v875
    %v877 = vpop.f32.mrf.mxu0
    %v878 = vadd.f32 0.0, %v877
    %879 = vmatmul.bf16.gmra.mxu0 %v523
    %v880 = vpop.f32.mrf.mxu0
    %v881 = vadd.f32 0.0, %v880
    %v882 = vpop.f32.mrf.mxu0
    %v883 = vadd.f32 0.0, %v882
    %884 = vmatmul.bf16.gmra.mxu0 %v524
    %v885 = vpop.f32.mrf.mxu0
    %v886 = vadd.f32 0.0, %v885
    %v887 = vpop.f32.mrf.mxu0
    %v888 = vadd.f32 0.0, %v887
    %889 = vmatmul.bf16.gmra.mxu0 %v525
    %v890 = vpop.f32.mrf.mxu0
    %v891 = vadd.f32 0.0, %v890
    %v892 = vpop.f32.mrf.mxu0
    %v893 = vadd.f32 0.0, %v892
    %894 = vmatmul.bf16.gmra.mxu0 %v526
    %v895 = vpop.f32.mrf.mxu0
    %v896 = vadd.f32 0.0, %v895
    %v897 = vpop.f32.mrf.mxu0
    %v898 = vadd.f32 0.0, %v897
    %899 = vmatmul.bf16.gmra.mxu0 %v527
    %v900 = vpop.f32.mrf.mxu0
    %v901 = vadd.f32 0.0, %v900
    %v902 = vpop.f32.mrf.mxu0
    %v903 = vadd.f32 0.0, %v902
    %904 = vmatmul.bf16.gmra.mxu0 %v528
    %v905 = vpop.f32.mrf.mxu0
    %v906 = vadd.f32 0.0, %v905
    %v907 = vpop.f32.mrf.mxu0
    %v908 = vadd.f32 0.0, %v907
    %909 = vmatmul.bf16.gmra.mxu0 %v529
    %v910 = vpop.f32.mrf.mxu0
    %v911 = vadd.f32 0.0, %v910
    %v912 = vpop.f32.mrf.mxu0
    %v913 = vadd.f32 0.0, %v912
    %914 = vmatmul.bf16.gmra.mxu0 %v530
    %v915 = vpop.f32.mrf.mxu0
    %v916 = vadd.f32 0.0, %v915
    %v917 = vpop.f32.mrf.mxu0
    %v918 = vadd.f32 0.0, %v917
    %919 = vmatmul.bf16.gmra.mxu0 %v531
    %v920 = vpop.f32.mrf.mxu0
    %v921 = vadd.f32 0.0, %v920
    %v922 = vpop.f32.mrf.mxu0
    %v923 = vadd.f32 0.0, %v922
    %924 = vmatmul.bf16.gmra.mxu0 %v532
    %v925 = vpop.f32.mrf.mxu0
    %v926 = vadd.f32 0.0, %v925
    %v927 = vpop.f32.mrf.mxu0
    %v928 = vadd.f32 0.0, %v927
    %929 = vmatmul.bf16.gmra.mxu0 %v533
    %v930 = vpop.f32.mrf.mxu0
    %v931 = vadd.f32 0.0, %v930
    %v932 = vpop.f32.mrf.mxu0
    %v933 = vadd.f32 0.0, %v932
    %934 = vmatmul.bf16.gmra.mxu0 %v534
    %v935 = vpop.f32.mrf.mxu0
    %v936 = vadd.f32 0.0, %v935
    %v937 = vpop.f32.mrf.mxu0
    %v938 = vadd.f32 0.0, %v937
    %939 = vmatmul.bf16.gmra.mxu0 %v535
    %v940 = vpop.f32.mrf.mxu0
    %v941 = vadd.f32 0.0, %v940
    %v942 = vpop.f32.mrf.mxu0
    %v943 = vadd.f32 0.0, %v942
    %944 = vmatmul.bf16.gmra.mxu0 %v536
    %v945 = vpop.f32.mrf.mxu0
    %v946 = vadd.f32 0.0, %v945
    %v947 = vpop.f32.mrf.mxu0
    %v948 = vadd.f32 0.0, %v947
    %949 = vmatmul.bf16.gmra.mxu0 %v537
    %v950 = vpop.f32.mrf.mxu0
    %v951 = vadd.f32 0.0, %v950
    %v952 = vpop.f32.mrf.mxu0
    %v953 = vadd.f32 0.0, %v952
    %954 = vmatmul.bf16.gmra.mxu0 %v538
    %v955 = vpop.f32.mrf.mxu0
    %v956 = vadd.f32 0.0, %v955
    %v957 = vpop.f32.mrf.mxu0
    %v958 = vadd.f32 0.0, %v957
    %959 = vmatmul.bf16.gmra.mxu0 %v539
    %v960 = vpop.f32.mrf.mxu0
    %v961 = vadd.f32 0.0, %v960
    %v962 = vpop.f32.mrf.mxu0
    %v963 = vadd.f32 0.0, %v962
    %964 = vmatmul.bf16.gmra.mxu0 %v540
    %v965 = vpop.f32.mrf.mxu0
    %v966 = vadd.f32 0.0, %v965
    %v967 = vpop.f32.mrf.mxu0
    %v968 = vadd.f32 0.0, %v967
    %969 = vmatmul.bf16.gmra.mxu0 %v541
    %v970 = vpop.f32.mrf.mxu0
    %v971 = vadd.f32 0.0, %v970
    %v972 = vpop.f32.mrf.mxu0
    %v973 = vadd.f32 0.0, %v972
    %974 = vmatmul.bf16.gmra.mxu0 %v542
    %v975 = vpop.f32.mrf.mxu0
    %v976 = vadd.f32 0.0, %v975
    %v977 = vpop.f32.mrf.mxu0
    %v978 = vadd.f32 0.0, %v977
    %979 = vmatmul.bf16.gmra.mxu0 %v543
    %v980 = vpop.f32.mrf.mxu0
    %v981 = vadd.f32 0.0, %v980
    %v982 = vpop.f32.mrf.mxu0
    %v983 = vadd.f32 0.0, %v982
    %984 = vdwg.mxu0
    %v985 = vadd.f32 %v666, %v668
    %v986 = vadd.f32 %v985, %v671
    %v987 = vadd.f32 %v986, %v673
    %v988 = vadd.f32 %v987, %v676
    %v989 = vadd.f32 %v988, %v678
    %v990 = vadd.f32 %v989, %v681
    %v991 = vadd.f32 %v990, %v683
    %v992 = vadd.f32 %v991, %v686
    %v993 = vadd.f32 %v992, %v688
    %v994 = vadd.f32 %v993, %v691
    %v995 = vadd.f32 %v994, %v693
    %v996 = vadd.f32 %v995, %v696
    %v997 = vadd.f32 %v996, %v698
    %v998 = vadd.f32 %v997, %v701
    %v999 = vadd.f32 %v998, %v703
    %v1000 = vadd.f32 %v999, %v706
    %v1001 = vadd.f32 %v1000, %v708
    %v1002 = vadd.f32 %v1001, %v711
    %v1003 = vadd.f32 %v1002, %v713
    %v1004 = vadd.f32 %v1003, %v716
    %v1005 = vadd.f32 %v1004, %v718
    %v1006 = vadd.f32 %v1005, %v721
    %v1007 = vadd.f32 %v1006, %v723
    %v1008 = vadd.f32 %v1007, %v726
    %v1009 = vadd.f32 %v1008, %v728
    %v1010 = vadd.f32 %v1009, %v731
    %v1011 = vadd.f32 %v1010, %v733
    %v1012 = vadd.f32 %v1011, %v736
    %v1013 = vadd.f32 %v1012, %v738
    %v1014 = vadd.f32 %v1013, %v741
    %v1015 = vadd.f32 %v1014, %v743
    %v1016 = vadd.f32 %v1015, %v746
    %v1017 = vadd.f32 %v1016, %v748
    %v1018 = vadd.f32 %v1017, %v751
    %v1019 = vadd.f32 %v1018, %v753
    %v1020 = vadd.f32 %v1019, %v756
    %v1021 = vadd.f32 %v1020, %v758
    %v1022 = vadd.f32 %v1021, %v761
    %v1023 = vadd.f32 %v1022, %v763
    %v1024 = vadd.f32 %v1023, %v766
    %v1025 = vadd.f32 %v1024, %v768
    %v1026 = vadd.f32 %v1025, %v771
    %v1027 = vadd.f32 %v1026, %v773
    %v1028 = vadd.f32 %v1027, %v776
    %v1029 = vadd.f32 %v1028, %v778
    %v1030 = vadd.f32 %v1029, %v781
    %v1031 = vadd.f32 %v1030, %v783
    %v1032 = vadd.f32 %v1031, %v786
    %v1033 = vadd.f32 %v1032, %v788
    %v1034 = vadd.f32 %v1033, %v791
    %v1035 = vadd.f32 %v1034, %v793
    %v1036 = vadd.f32 %v1035, %v796
    %v1037 = vadd.f32 %v1036, %v798
    %v1038 = vadd.f32 %v1037, %v801
    %v1039 = vadd.f32 %v1038, %v803
    %v1040 = vadd.f32 %v1039, %v806
    %v1041 = vadd.f32 %v1040, %v808
    %v1042 = vadd.f32 %v1041, %v811
    %v1043 = vadd.f32 %v1042, %v813
    %v1044 = vadd.f32 %v1043, %v816
    %v1045 = vadd.f32 %v1044, %v818
    %v1046 = vadd.f32 %v1045, %v821
    %v1047 = vadd.f32 %v1046, %v823
    %v1048 = vrot.slane %v1047, 4
    %v1049 = vadd.f32 %v1047, %v1048
    %v1050 = vrot.slane %v1049, 2
    %v1051 = vadd.f32 %v1049, %v1050
    %v1052 = vrot.slane %v1051, 1
    %v1053 = vadd.f32 %v1051, %v1052
    %v1054 = vadd.f32 %v826, %v828
    %v1055 = vadd.f32 %v1054, %v831
    %v1056 = vadd.f32 %v1055, %v833
    %v1057 = vadd.f32 %v1056, %v836
    %v1058 = vadd.f32 %v1057, %v838
    %v1059 = vadd.f32 %v1058, %v841
    %v1060 = vadd.f32 %v1059, %v843
    %v1061 = vadd.f32 %v1060, %v846
    %v1062 = vadd.f32 %v1061, %v848
    %v1063 = vadd.f32 %v1062, %v851
    %v1064 = vadd.f32 %v1063, %v853
    %v1065 = vadd.f32 %v1064, %v856
    %v1066 = vadd.f32 %v1065, %v858
    %v1067 = vadd.f32 %v1066, %v861
    %v1068 = vadd.f32 %v1067, %v863
    %v1069 = vadd.f32 %v1068, %v866
    %v1070 = vadd.f32 %v1069, %v868
    %v1071 = vadd.f32 %v1070, %v871
    %v1072 = vadd.f32 %v1071, %v873
    %v1073 = vadd.f32 %v1072, %v876
    %v1074 = vadd.f32 %v1073, %v878
    %v1075 = vadd.f32 %v1074, %v881
    %v1076 = vadd.f32 %v1075, %v883
    %v1077 = vadd.f32 %v1076, %v886
    %v1078 = vadd.f32 %v1077, %v888
    %v1079 = vadd.f32 %v1078, %v891
    %v1080 = vadd.f32 %v1079, %v893
    %v1081 = vadd.f32 %v1080, %v896
    %v1082 = vadd.f32 %v1081, %v898
    %v1083 = vadd.f32 %v1082, %v901
    %v1084 = vadd.f32 %v1083, %v903
    %v1085 = vadd.f32 %v1084, %v906
    %v1086 = vadd.f32 %v1085, %v908
    %v1087 = vadd.f32 %v1086, %v911
    %v1088 = vadd.f32 %v1087, %v913
    %v1089 = vadd.f32 %v1088, %v916
    %v1090 = vadd.f32 %v1089, %v918
    %v1091 = vadd.f32 %v1090, %v921
    %v1092 = vadd.f32 %v1091, %v923
    %v1093 = vadd.f32 %v1092, %v926
    %v1094 = vadd.f32 %v1093, %v928
    %v1095 = vadd.f32 %v1094, %v931
    %v1096 = vadd.f32 %v1095, %v933
    %v1097 = vadd.f32 %v1096, %v936
    %v1098 = vadd.f32 %v1097, %v938
    %v1099 = vadd.f32 %v1098, %v941
    %v1100 = vadd.f32 %v1099, %v943
    %v1101 = vadd.f32 %v1100, %v946
    %v1102 = vadd.f32 %v1101, %v948
    %v1103 = vadd.f32 %v1102, %v951
    %v1104 = vadd.f32 %v1103, %v953
    %v1105 = vadd.f32 %v1104, %v956
    %v1106 = vadd.f32 %v1105, %v958
    %v1107 = vadd.f32 %v1106, %v961
    %v1108 = vadd.f32 %v1107, %v963
    %v1109 = vadd.f32 %v1108, %v966
    %v1110 = vadd.f32 %v1109, %v968
    %v1111 = vadd.f32 %v1110, %v971
    %v1112 = vadd.f32 %v1111, %v973
    %v1113 = vadd.f32 %v1112, %v976
    %v1114 = vadd.f32 %v1113, %v978
    %v1115 = vadd.f32 %v1114, %v981
    %v1116 = vadd.f32 %v1115, %v983
    %v1117 = vrot.slane %v1116, 4
    %v1118 = vadd.f32 %v1116, %v1117
    %v1119 = vrot.slane %v1118, 2
    %v1120 = vadd.f32 %v1118, %v1119
    %v1121 = vrot.slane %v1120, 1
    %v1122 = vadd.f32 %v1120, %v1121
    %v1123 = vmul.f32 %v1053, 0.001953125
    %v1124 = vmul.f32 %v1122, 0.001953125
    %v1125 = vmul.f32 %v666, %v666
    %v1126 = vmul.f32 %v668, %v668
    %v1127 = vmul.f32 %v671, %v671
    %v1128 = vmul.f32 %v673, %v673
    %v1129 = vmul.f32 %v676, %v676
    %v1130 = vmul.f32 %v678, %v678
    %v1131 = vmul.f32 %v681, %v681
    %v1132 = vmul.f32 %v683, %v683
    %v1133 = vmul.f32 %v686, %v686
    %v1134 = vmul.f32 %v688, %v688
    %v1135 = vmul.f32 %v691, %v691
    %v1136 = vmul.f32 %v693, %v693
    %v1137 = vmul.f32 %v696, %v696
    %v1138 = vmul.f32 %v698, %v698
    %v1139 = vmul.f32 %v701, %v701
    %v1140 = vmul.f32 %v703, %v703
    %v1141 = vmul.f32 %v706, %v706
    %v1142 = vmul.f32 %v708, %v708
    %v1143 = vmul.f32 %v711, %v711
    %v1144 = vmul.f32 %v713, %v713
    %v1145 = vmul.f32 %v716, %v716
    %v1146 = vmul.f32 %v718, %v718
    %v1147 = vmul.f32 %v721, %v721
    %v1148 = vmul.f32 %v723, %v723
    %v1149 = vmul.f32 %v726, %v726
    %v1150 = vmul.f32 %v728, %v728
    %v1151 = vmul.f32 %v731, %v731
    %v1152 = vmul.f32 %v733, %v733
    %v1153 = vmul.f32 %v736, %v736
    %v1154 = vmul.f32 %v738, %v738
    %v1155 = vmul.f32 %v741, %v741
    %v1156 = vmul.f32 %v743, %v743
    %v1157 = vmul.f32 %v746, %v746
    %v1158 = vmul.f32 %v748, %v748
    %v1159 = vmul.f32 %v751, %v751
    %v1160 = vmul.f32 %v753, %v753
    %v1161 = vmul.f32 %v756, %v756
    %v1162 = vmul.f32 %v758, %v758
    %v1163 = vmul.f32 %v761, %v761
    %v1164 = vmul.f32 %v763, %v763
    %v1165 = vmul.f32 %v766, %v766
    %v1166 = vmul.f32 %v768, %v768
    %v1167 = vmul.f32 %v771, %v771
    %v1168 = vmul.f32 %v773, %v773
    %v1169 = vmul.f32 %v776, %v776
    %v1170 = vmul.f32 %v778, %v778
    %v1171 = vmul.f32 %v781, %v781
    %v1172 = vmul.f32 %v783, %v783
    %v1173 = vmul.f32 %v786, %v786
    %v1174 = vmul.f32 %v788, %v788
    %v1175 = vmul.f32 %v791, %v791
    %v1176 = vmul.f32 %v793, %v793
    %v1177 = vmul.f32 %v796, %v796
    %v1178 = vmul.f32 %v798, %v798
    %v1179 = vmul.f32 %v801, %v801
    %v1180 = vmul.f32 %v803, %v803
    %v1181 = vmul.f32 %v806, %v806
    %v1182 = vmul.f32 %v808, %v808
    %v1183 = vmul.f32 %v811, %v811
    %v1184 = vmul.f32 %v813, %v813
    %v1185 = vmul.f32 %v816, %v816
    %v1186 = vmul.f32 %v818, %v818
    %v1187 = vmul.f32 %v821, %v821
    %v1188 = vmul.f32 %v823, %v823
    %v1189 = vmul.f32 %v826, %v826
    %v1190 = vmul.f32 %v828, %v828
    %v1191 = vmul.f32 %v831, %v831
    %v1192 = vmul.f32 %v833, %v833
    %v1193 = vmul.f32 %v836, %v836
    %v1194 = vmul.f32 %v838, %v838
    %v1195 = vmul.f32 %v841, %v841
    %v1196 = vmul.f32 %v843, %v843
    %v1197 = vmul.f32 %v846, %v846
    %v1198 = vmul.f32 %v848, %v848
    %v1199 = vmul.f32 %v851, %v851
    %v1200 = vmul.f32 %v853, %v853
    %v1201 = vmul.f32 %v856, %v856
    %v1202 = vmul.f32 %v858, %v858
    %v1203 = vmul.f32 %v861, %v861
    %v1204 = vmul.f32 %v863, %v863
    %v1205 = vmul.f32 %v866, %v866
    %v1206 = vmul.f32 %v868, %v868
    %v1207 = vmul.f32 %v871, %v871
    %v1208 = vmul.f32 %v873, %v873
    %v1209 = vmul.f32 %v876, %v876
    %v1210 = vmul.f32 %v878, %v878
    %v1211 = vmul.f32 %v881, %v881
    %v1212 = vmul.f32 %v883, %v883
    %v1213 = vmul.f32 %v886, %v886
    %v1214 = vmul.f32 %v888, %v888
    %v1215 = vmul.f32 %v891, %v891
    %v1216 = vmul.f32 %v893, %v893
    %v1217 = vmul.f32 %v896, %v896
    %v1218 = vmul.f32 %v898, %v898
    %v1219 = vmul.f32 %v901, %v901
    %v1220 = vmul.f32 %v903, %v903
    %v1221 = vmul.f32 %v906, %v906
    %v1222 = vmul.f32 %v908, %v908
    %v1223 = vmul.f32 %v911, %v911
    %v1224 = vmul.f32 %v913, %v913
    %v1225 = vmul.f32 %v916, %v916
    %v1226 = vmul.f32 %v918, %v918
    %v1227 = vmul.f32 %v921, %v921
    %v1228 = vmul.f32 %v923, %v923
    %v1229 = vmul.f32 %v926, %v926
    %v1230 = vmul.f32 %v928, %v928
    %v1231 = vmul.f32 %v931, %v931
    %v1232 = vmul.f32 %v933, %v933
    %v1233 = vmul.f32 %v936, %v936
    %v1234 = vmul.f32 %v938, %v938
    %v1235 = vmul.f32 %v941, %v941
    %v1236 = vmul.f32 %v943, %v943
    %v1237 = vmul.f32 %v946, %v946
    %v1238 = vmul.f32 %v948, %v948
    %v1239 = vmul.f32 %v951, %v951
    %v1240 = vmul.f32 %v953, %v953
    %v1241 = vmul.f32 %v956, %v956
    %v1242 = vmul.f32 %v958, %v958
    %v1243 = vmul.f32 %v961, %v961
    %v1244 = vmul.f32 %v963, %v963
    %v1245 = vmul.f32 %v966, %v966
    %v1246 = vmul.f32 %v968, %v968
    %v1247 = vmul.f32 %v971, %v971
    %v1248 = vmul.f32 %v973, %v973
    %v1249 = vmul.f32 %v976, %v976
    %v1250 = vmul.f32 %v978, %v978
    %v1251 = vmul.f32 %v981, %v981
    %v1252 = vmul.f32 %v983, %v983
    %v1253 = vadd.f32 %v1125, %v1126
    %v1254 = vadd.f32 %v1253, %v1127
    %v1255 = vadd.f32 %v1254, %v1128
    %v1256 = vadd.f32 %v1255, %v1129
    %v1257 = vadd.f32 %v1256, %v1130
    %v1258 = vadd.f32 %v1257, %v1131
    %v1259 = vadd.f32 %v1258, %v1132
    %v1260 = vadd.f32 %v1259, %v1133
    %v1261 = vadd.f32 %v1260, %v1134
    %v1262 = vadd.f32 %v1261, %v1135
    %v1263 = vadd.f32 %v1262, %v1136
    %v1264 = vadd.f32 %v1263, %v1137
    %v1265 = vadd.f32 %v1264, %v1138
    %v1266 = vadd.f32 %v1265, %v1139
    %v1267 = vadd.f32 %v1266, %v1140
    %v1268 = vadd.f32 %v1267, %v1141
    %v1269 = vadd.f32 %v1268, %v1142
    %v1270 = vadd.f32 %v1269, %v1143
    %v1271 = vadd.f32 %v1270, %v1144
    %v1272 = vadd.f32 %v1271, %v1145
    %v1273 = vadd.f32 %v1272, %v1146
    %v1274 = vadd.f32 %v1273, %v1147
    %v1275 = vadd.f32 %v1274, %v1148
    %v1276 = vadd.f32 %v1275, %v1149
    %v1277 = vadd.f32 %v1276, %v1150
    %v1278 = vadd.f32 %v1277, %v1151
    %v1279 = vadd.f32 %v1278, %v1152
    %v1280 = vadd.f32 %v1279, %v1153
    %v1281 = vadd.f32 %v1280, %v1154
    %v1282 = vadd.f32 %v1281, %v1155
    %v1283 = vadd.f32 %v1282, %v1156
    %v1284 = vadd.f32 %v1283, %v1157
    %v1285 = vadd.f32 %v1284, %v1158
    %v1286 = vadd.f32 %v1285, %v1159
    %v1287 = vadd.f32 %v1286, %v1160
    %v1288 = vadd.f32 %v1287, %v1161
    %v1289 = vadd.f32 %v1288, %v1162
    %v1290 = vadd.f32 %v1289, %v1163
    %v1291 = vadd.f32 %v1290, %v1164
    %v1292 = vadd.f32 %v1291, %v1165
    %v1293 = vadd.f32 %v1292, %v1166
    %v1294 = vadd.f32 %v1293, %v1167
    %v1295 = vadd.f32 %v1294, %v1168
    %v1296 = vadd.f32 %v1295, %v1169
    %v1297 = vadd.f32 %v1296, %v1170
    %v1298 = vadd.f32 %v1297, %v1171
    %v1299 = vadd.f32 %v1298, %v1172
    %v1300 = vadd.f32 %v1299, %v1173
    %v1301 = vadd.f32 %v1300, %v1174
    %v1302 = vadd.f32 %v1301, %v1175
    %v1303 = vadd.f32 %v1302, %v1176
    %v1304 = vadd.f32 %v1303, %v1177
    %v1305 = vadd.f32 %v1304, %v1178
    %v1306 = vadd.f32 %v1305, %v1179
    %v1307 = vadd.f32 %v1306, %v1180
    %v1308 = vadd.f32 %v1307, %v1181
    %v1309 = vadd.f32 %v1308, %v1182
    %v1310 = vadd.f32 %v1309, %v1183
    %v1311 = vadd.f32 %v1310, %v1184
    %v1312 = vadd.f32 %v1311, %v1185
    %v1313 = vadd.f32 %v1312, %v1186
    %v1314 = vadd.f32 %v1313, %v1187
    %v1315 = vadd.f32 %v1314, %v1188
    %v1316 = vrot.slane %v1315, 4
    %v1317 = vadd.f32 %v1315, %v1316
    %v1318 = vrot.slane %v1317, 2
    %v1319 = vadd.f32 %v1317, %v1318
    %v1320 = vrot.slane %v1319, 1
    %v1321 = vadd.f32 %v1319, %v1320
    %v1322 = vadd.f32 %v1189, %v1190
    %v1323 = vadd.f32 %v1322, %v1191
    %v1324 = vadd.f32 %v1323, %v1192
    %v1325 = vadd.f32 %v1324, %v1193
    %v1326 = vadd.f32 %v1325, %v1194
    %v1327 = vadd.f32 %v1326, %v1195
    %v1328 = vadd.f32 %v1327, %v1196
    %v1329 = vadd.f32 %v1328, %v1197
    %v1330 = vadd.f32 %v1329, %v1198
    %v1331 = vadd.f32 %v1330, %v1199
    %v1332 = vadd.f32 %v1331, %v1200
    %v1333 = vadd.f32 %v1332, %v1201
    %v1334 = vadd.f32 %v1333, %v1202
    %v1335 = vadd.f32 %v1334, %v1203
    %v1336 = vadd.f32 %v1335, %v1204
    %v1337 = vadd.f32 %v1336, %v1205
    %v1338 = vadd.f32 %v1337, %v1206
    %v1339 = vadd.f32 %v1338, %v1207
    %v1340 = vadd.f32 %v1339, %v1208
    %v1341 = vadd.f32 %v1340, %v1209
    %v1342 = vadd.f32 %v1341, %v1210
    %v1343 = vadd.f32 %v1342, %v1211
    %v1344 = vadd.f32 %v1343, %v1212
    %v1345 = vadd.f32 %v1344, %v1213
    %v1346 = vadd.f32 %v1345, %v1214
    %v1347 = vadd.f32 %v1346, %v1215
    %v1348 = vadd.f32 %v1347, %v1216
    %v1349 = vadd.f32 %v1348, %v1217
    %v1350 = vadd.f32 %v1349, %v1218
    %v1351 = vadd.f32 %v1350, %v1219
    %v1352 = vadd.f32 %v1351, %v1220
    %v1353 = vadd.f32 %v1352, %v1221
    %v1354 = vadd.f32 %v1353, %v1222
    %v1355 = vadd.f32 %v1354, %v1223
    %v1356 = vadd.f32 %v1355, %v1224
    %v1357 = vadd.f32 %v1356, %v1225
    %v1358 = vadd.f32 %v1357, %v1226
    %v1359 = vadd.f32 %v1358, %v1227
    %v1360 = vadd.f32 %v1359, %v1228
    %v1361 = vadd.f32 %v1360, %v1229
    %v1362 = vadd.f32 %v1361, %v1230
    %v1363 = vadd.f32 %v1362, %v1231
    %v1364 = vadd.f32 %v1363, %v1232
    %v1365 = vadd.f32 %v1364, %v1233
    %v1366 = vadd.f32 %v1365, %v1234
    %v1367 = vadd.f32 %v1366, %v1235
    %v1368 = vadd.f32 %v1367, %v1236
    %v1369 = vadd.f32 %v1368, %v1237
    %v1370 = vadd.f32 %v1369, %v1238
    %v1371 = vadd.f32 %v1370, %v1239
    %v1372 = vadd.f32 %v1371, %v1240
    %v1373 = vadd.f32 %v1372, %v1241
    %v1374 = vadd.f32 %v1373, %v1242
    %v1375 = vadd.f32 %v1374, %v1243
    %v1376 = vadd.f32 %v1375, %v1244
    %v1377 = vadd.f32 %v1376, %v1245
    %v1378 = vadd.f32 %v1377, %v1246
    %v1379 = vadd.f32 %v1378, %v1247
    %v1380 = vadd.f32 %v1379, %v1248
    %v1381 = vadd.f32 %v1380, %v1249
    %v1382 = vadd.f32 %v1381, %v1250
    %v1383 = vadd.f32 %v1382, %v1251
    %v1384 = vadd.f32 %v1383, %v1252
    %v1385 = vrot.slane %v1384, 4
    %v1386 = vadd.f32 %v1384, %v1385
    %v1387 = vrot.slane %v1386, 2
    %v1388 = vadd.f32 %v1386, %v1387
    %v1389 = vrot.slane %v1388, 1
    %v1390 = vadd.f32 %v1388, %v1389
    %v1391 = vmul.f32 %v1321, 0.001953125
    %v1392 = vmul.f32 %v1390, 0.001953125
    %v1393 = vmul.f32 %v1123, %v1123
    %v1394 = vmul.f32 %v1124, %v1124
    %v1395 = vsub.f32 %v1391, %v1393
    %v1396 = vsub.f32 %v1392, %v1394
    %v1397 = vsub.f32 %v666, %v1123
    %v1398 = vsub.f32 %v668, %v1123
    %v1399 = vsub.f32 %v671, %v1123
    %v1400 = vsub.f32 %v673, %v1123
    %v1401 = vsub.f32 %v676, %v1123
    %v1402 = vsub.f32 %v678, %v1123
    %v1403 = vsub.f32 %v681, %v1123
    %v1404 = vsub.f32 %v683, %v1123
    %v1405 = vsub.f32 %v686, %v1123
    %v1406 = vsub.f32 %v688, %v1123
    %v1407 = vsub.f32 %v691, %v1123
    %v1408 = vsub.f32 %v693, %v1123
    %v1409 = vsub.f32 %v696, %v1123
    %v1410 = vsub.f32 %v698, %v1123
    %v1411 = vsub.f32 %v701, %v1123
    %v1412 = vsub.f32 %v703, %v1123
    %v1413 = vsub.f32 %v706, %v1123
    %v1414 = vsub.f32 %v708, %v1123
    %v1415 = vsub.f32 %v711, %v1123
    %v1416 = vsub.f32 %v713, %v1123
    %v1417 = vsub.f32 %v716, %v1123
    %v1418 = vsub.f32 %v718, %v1123
    %v1419 = vsub.f32 %v721, %v1123
    %v1420 = vsub.f32 %v723, %v1123
    %v1421 = vsub.f32 %v726, %v1123
    %v1422 = vsub.f32 %v728, %v1123
    %v1423 = vsub.f32 %v731, %v1123
    %v1424 = vsub.f32 %v733, %v1123
    %v1425 = vsub.f32 %v736, %v1123
    %v1426 = vsub.f32 %v738, %v1123
    %v1427 = vsub.f32 %v741, %v1123
    %v1428 = vsub.f32 %v743, %v1123
    %v1429 = vsub.f32 %v746, %v1123
    %v1430 = vsub.f32 %v748, %v1123
    %v1431 = vsub.f32 %v751, %v1123
    %v1432 = vsub.f32 %v753, %v1123
    %v1433 = vsub.f32 %v756, %v1123
    %v1434 = vsub.f32 %v758, %v1123
    %v1435 = vsub.f32 %v761, %v1123
    %v1436 = vsub.f32 %v763, %v1123
    %v1437 = vsub.f32 %v766, %v1123
    %v1438 = vsub.f32 %v768, %v1123
    %v1439 = vsub.f32 %v771, %v1123
    %v1440 = vsub.f32 %v773, %v1123
    %v1441 = vsub.f32 %v776, %v1123
    %v1442 = vsub.f32 %v778, %v1123
    %v1443 = vsub.f32 %v781, %v1123
    %v1444 = vsub.f32 %v783, %v1123
    %v1445 = vsub.f32 %v786, %v1123
    %v1446 = vsub.f32 %v788, %v1123
    %v1447 = vsub.f32 %v791, %v1123
    %v1448 = vsub.f32 %v793, %v1123
    %v1449 = vsub.f32 %v796, %v1123
    %v1450 = vsub.f32 %v798, %v1123
    %v1451 = vsub.f32 %v801, %v1123
    %v1452 = vsub.f32 %v803, %v1123
    %v1453 = vsub.f32 %v806, %v1123
    %v1454 = vsub.f32 %v808, %v1123
    %v1455 = vsub.f32 %v811, %v1123
    %v1456 = vsub.f32 %v813, %v1123
    %v1457 = vsub.f32 %v816, %v1123
    %v1458 = vsub.f32 %v818, %v1123
    %v1459 = vsub.f32 %v821, %v1123
    %v1460 = vsub.f32 %v823, %v1123
    %v1461 = vsub.f32 %v826, %v1124
    %v1462 = vsub.f32 %v828, %v1124
    %v1463 = vsub.f32 %v831, %v1124
    %v1464 = vsub.f32 %v833, %v1124
    %v1465 = vsub.f32 %v836, %v1124
    %v1466 = vsub.f32 %v838, %v1124
    %v1467 = vsub.f32 %v841, %v1124
    %v1468 = vsub.f32 %v843, %v1124
    %v1469 = vsub.f32 %v846, %v1124
    %v1470 = vsub.f32 %v848, %v1124
    %v1471 = vsub.f32 %v851, %v1124
    %v1472 = vsub.f32 %v853, %v1124
    %v1473 = vsub.f32 %v856, %v1124
    %v1474 = vsub.f32 %v858, %v1124
    %v1475 = vsub.f32 %v861, %v1124
    %v1476 = vsub.f32 %v863, %v1124
    %v1477 = vsub.f32 %v866, %v1124
    %v1478 = vsub.f32 %v868, %v1124
    %v1479 = vsub.f32 %v871, %v1124
    %v1480 = vsub.f32 %v873, %v1124
    %v1481 = vsub.f32 %v876, %v1124
    %v1482 = vsub.f32 %v878, %v1124
    %v1483 = vsub.f32 %v881, %v1124
    %v1484 = vsub.f32 %v883, %v1124
    %v1485 = vsub.f32 %v886, %v1124
    %v1486 = vsub.f32 %v888, %v1124
    %v1487 = vsub.f32 %v891, %v1124
    %v1488 = vsub.f32 %v893, %v1124
    %v1489 = vsub.f32 %v896, %v1124
    %v1490 = vsub.f32 %v898, %v1124
    %v1491 = vsub.f32 %v901, %v1124
    %v1492 = vsub.f32 %v903, %v1124
    %v1493 = vsub.f32 %v906, %v1124
    %v1494 = vsub.f32 %v908, %v1124
    %v1495 = vsub.f32 %v911, %v1124
    %v1496 = vsub.f32 %v913, %v1124
    %v1497 = vsub.f32 %v916, %v1124
    %v1498 = vsub.f32 %v918, %v1124
    %v1499 = vsub.f32 %v921, %v1124
    %v1500 = vsub.f32 %v923, %v1124
    %v1501 = vsub.f32 %v926, %v1124
    %v1502 = vsub.f32 %v928, %v1124
    %v1503 = vsub.f32 %v931, %v1124
    %v1504 = vsub.f32 %v933, %v1124
    %v1505 = vsub.f32 %v936, %v1124
    %v1506 = vsub.f32 %v938, %v1124
    %v1507 = vsub.f32 %v941, %v1124
    %v1508 = vsub.f32 %v943, %v1124
    %v1509 = vsub.f32 %v946, %v1124
    %v1510 = vsub.f32 %v948, %v1124
    %v1511 = vsub.f32 %v951, %v1124
    %v1512 = vsub.f32 %v953, %v1124
    %v1513 = vsub.f32 %v956, %v1124
    %v1514 = vsub.f32 %v958, %v1124
    %v1515 = vsub.f32 %v961, %v1124
    %v1516 = vsub.f32 %v963, %v1124
    %v1517 = vsub.f32 %v966, %v1124
    %v1518 = vsub.f32 %v968, %v1124
    %v1519 = vsub.f32 %v971, %v1124
    %v1520 = vsub.f32 %v973, %v1124
    %v1521 = vsub.f32 %v976, %v1124
    %v1522 = vsub.f32 %v978, %v1124
    %v1523 = vsub.f32 %v981, %v1124
    %v1524 = vsub.f32 %v983, %v1124
    %v1525 = vperm.slane %v79, 0
    %v1526 = vmul.f32 %v1525, %v1397
    %v1527 = vmul.f32 %v1525, %v1398
    %v1528 = vmul.f32 %v1525, %v1399
    %v1529 = vmul.f32 %v1525, %v1400
    %v1530 = vmul.f32 %v1525, %v1401
    %v1531 = vmul.f32 %v1525, %v1402
    %v1532 = vmul.f32 %v1525, %v1403
    %v1533 = vmul.f32 %v1525, %v1404
    %v1534 = vmul.f32 %v1525, %v1405
    %v1535 = vmul.f32 %v1525, %v1406
    %v1536 = vmul.f32 %v1525, %v1407
    %v1537 = vmul.f32 %v1525, %v1408
    %v1538 = vmul.f32 %v1525, %v1409
    %v1539 = vmul.f32 %v1525, %v1410
    %v1540 = vmul.f32 %v1525, %v1411
    %v1541 = vmul.f32 %v1525, %v1412
    %v1542 = vmul.f32 %v1525, %v1413
    %v1543 = vmul.f32 %v1525, %v1414
    %v1544 = vmul.f32 %v1525, %v1415
    %v1545 = vmul.f32 %v1525, %v1416
    %v1546 = vmul.f32 %v1525, %v1417
    %v1547 = vmul.f32 %v1525, %v1418
    %v1548 = vmul.f32 %v1525, %v1419
    %v1549 = vmul.f32 %v1525, %v1420
    %v1550 = vmul.f32 %v1525, %v1421
    %v1551 = vmul.f32 %v1525, %v1422
    %v1552 = vmul.f32 %v1525, %v1423
    %v1553 = vmul.f32 %v1525, %v1424
    %v1554 = vmul.f32 %v1525, %v1425
    %v1555 = vmul.f32 %v1525, %v1426
    %v1556 = vmul.f32 %v1525, %v1427
    %v1557 = vmul.f32 %v1525, %v1428
    %v1558 = vmul.f32 %v1525, %v1429
    %v1559 = vmul.f32 %v1525, %v1430
    %v1560 = vmul.f32 %v1525, %v1431
    %v1561 = vmul.f32 %v1525, %v1432
    %v1562 = vmul.f32 %v1525, %v1433
    %v1563 = vmul.f32 %v1525, %v1434
    %v1564 = vmul.f32 %v1525, %v1435
    %v1565 = vmul.f32 %v1525, %v1436
    %v1566 = vmul.f32 %v1525, %v1437
    %v1567 = vmul.f32 %v1525, %v1438
    %v1568 = vmul.f32 %v1525, %v1439
    %v1569 = vmul.f32 %v1525, %v1440
    %v1570 = vmul.f32 %v1525, %v1441
    %v1571 = vmul.f32 %v1525, %v1442
    %v1572 = vmul.f32 %v1525, %v1443
    %v1573 = vmul.f32 %v1525, %v1444
    %v1574 = vmul.f32 %v1525, %v1445
    %v1575 = vmul.f32 %v1525, %v1446
    %v1576 = vmul.f32 %v1525, %v1447
    %v1577 = vmul.f32 %v1525, %v1448
    %v1578 = vmul.f32 %v1525, %v1449
    %v1579 = vmul.f32 %v1525, %v1450
    %v1580 = vmul.f32 %v1525, %v1451
    %v1581 = vmul.f32 %v1525, %v1452
    %v1582 = vmul.f32 %v1525, %v1453
    %v1583 = vmul.f32 %v1525, %v1454
    %v1584 = vmul.f32 %v1525, %v1455
    %v1585 = vmul.f32 %v1525, %v1456
    %v1586 = vmul.f32 %v1525, %v1457
    %v1587 = vmul.f32 %v1525, %v1458
    %v1588 = vmul.f32 %v1525, %v1459
    %v1589 = vmul.f32 %v1525, %v1460
    %v1590 = vmul.f32 %v1525, %v1461
    %v1591 = vmul.f32 %v1525, %v1462
    %v1592 = vmul.f32 %v1525, %v1463
    %v1593 = vmul.f32 %v1525, %v1464
    %v1594 = vmul.f32 %v1525, %v1465
    %v1595 = vmul.f32 %v1525, %v1466
    %v1596 = vmul.f32 %v1525, %v1467
    %v1597 = vmul.f32 %v1525, %v1468
    %v1598 = vmul.f32 %v1525, %v1469
    %v1599 = vmul.f32 %v1525, %v1470
    %v1600 = vmul.f32 %v1525, %v1471
    %v1601 = vmul.f32 %v1525, %v1472
    %v1602 = vmul.f32 %v1525, %v1473
    %v1603 = vmul.f32 %v1525, %v1474
    %v1604 = vmul.f32 %v1525, %v1475
    %v1605 = vmul.f32 %v1525, %v1476
    %v1606 = vmul.f32 %v1525, %v1477
    %v1607 = vmul.f32 %v1525, %v1478
    %v1608 = vmul.f32 %v1525, %v1479
    %v1609 = vmul.f32 %v1525, %v1480
    %v1610 = vmul.f32 %v1525, %v1481
    %v1611 = vmul.f32 %v1525, %v1482
    %v1612 = vmul.f32 %v1525, %v1483
    %v1613 = vmul.f32 %v1525, %v1484
    %v1614 = vmul.f32 %v1525, %v1485
    %v1615 = vmul.f32 %v1525, %v1486
    %v1616 = vmul.f32 %v1525, %v1487
    %v1617 = vmul.f32 %v1525, %v1488
    %v1618 = vmul.f32 %v1525, %v1489
    %v1619 = vmul.f32 %v1525, %v1490
    %v1620 = vmul.f32 %v1525, %v1491
    %v1621 = vmul.f32 %v1525, %v1492
    %v1622 = vmul.f32 %v1525, %v1493
    %v1623 = vmul.f32 %v1525, %v1494
    %v1624 = vmul.f32 %v1525, %v1495
    %v1625 = vmul.f32 %v1525, %v1496
    %v1626 = vmul.f32 %v1525, %v1497
    %v1627 = vmul.f32 %v1525, %v1498
    %v1628 = vmul.f32 %v1525, %v1499
    %v1629 = vmul.f32 %v1525, %v1500
    %v1630 = vmul.f32 %v1525, %v1501
    %v1631 = vmul.f32 %v1525, %v1502
    %v1632 = vmul.f32 %v1525, %v1503
    %v1633 = vmul.f32 %v1525, %v1504
    %v1634 = vmul.f32 %v1525, %v1505
    %v1635 = vmul.f32 %v1525, %v1506
    %v1636 = vmul.f32 %v1525, %v1507
    %v1637 = vmul.f32 %v1525, %v1508
    %v1638 = vmul.f32 %v1525, %v1509
    %v1639 = vmul.f32 %v1525, %v1510
    %v1640 = vmul.f32 %v1525, %v1511
    %v1641 = vmul.f32 %v1525, %v1512
    %v1642 = vmul.f32 %v1525, %v1513
    %v1643 = vmul.f32 %v1525, %v1514
    %v1644 = vmul.f32 %v1525, %v1515
    %v1645 = vmul.f32 %v1525, %v1516
    %v1646 = vmul.f32 %v1525, %v1517
    %v1647 = vmul.f32 %v1525, %v1518
    %v1648 = vmul.f32 %v1525, %v1519
    %v1649 = vmul.f32 %v1525, %v1520
    %v1650 = vmul.f32 %v1525, %v1521
    %v1651 = vmul.f32 %v1525, %v1522
    %v1652 = vmul.f32 %v1525, %v1523
    %v1653 = vmul.f32 %v1525, %v1524
    %v1654 = vadd.f32 %v1395, 1e-05
    %v1655 = vadd.f32 %v1396, 1e-05
    %v1656 = vrsqrt.pop %v1654
    %v1657 = vmul.f32 %v1656, %v1654
    %v1658 = vmul.f32 %v1657, %v1656
    %v1659 = vmul.f32 0.5, %v1658
    %v1660 = vsub.f32 1.5, %v1659
    %v1661 = vmul.f32 %v1656, %v1660
    %vm1662 = vweird.f32 %v1654
    %vm1663 = vweird.f32 %v1656
    %vm1664 = vmor %vm1662, %vm1663
    %v1665 = vsel %vm1664, %v1656, %v1661
    %v1666 = vrsqrt.pop %v1655
    %v1667 = vmul.f32 %v1666, %v1655
    %v1668 = vmul.f32 %v1667, %v1666
    %v1669 = vmul.f32 0.5, %v1668
    %v1670 = vsub.f32 1.5, %v1669
    %v1671 = vmul.f32 %v1666, %v1670
    %vm1672 = vweird.f32 %v1655
    %vm1673 = vweird.f32 %v1666
    %vm1674 = vmor %vm1672, %vm1673
    %v1675 = vsel %vm1674, %v1666, %v1671
    %v1676 = vmul.f32 %v1526, %v1665
    %v1677 = vmul.f32 %v1527, %v1665
    %v1678 = vmul.f32 %v1528, %v1665
    %v1679 = vmul.f32 %v1529, %v1665
    %v1680 = vmul.f32 %v1530, %v1665
    %v1681 = vmul.f32 %v1531, %v1665
    %v1682 = vmul.f32 %v1532, %v1665
    %v1683 = vmul.f32 %v1533, %v1665
    %v1684 = vmul.f32 %v1534, %v1665
    %v1685 = vmul.f32 %v1535, %v1665
    %v1686 = vmul.f32 %v1536, %v1665
    %v1687 = vmul.f32 %v1537, %v1665
    %v1688 = vmul.f32 %v1538, %v1665
    %v1689 = vmul.f32 %v1539, %v1665
    %v1690 = vmul.f32 %v1540, %v1665
    %v1691 = vmul.f32 %v1541, %v1665
    %v1692 = vmul.f32 %v1542, %v1665
    %v1693 = vmul.f32 %v1543, %v1665
    %v1694 = vmul.f32 %v1544, %v1665
    %v1695 = vmul.f32 %v1545, %v1665
    %v1696 = vmul.f32 %v1546, %v1665
    %v1697 = vmul.f32 %v1547, %v1665
    %v1698 = vmul.f32 %v1548, %v1665
    %v1699 = vmul.f32 %v1549, %v1665
    %v1700 = vmul.f32 %v1550, %v1665
    %v1701 = vmul.f32 %v1551, %v1665
    %v1702 = vmul.f32 %v1552, %v1665
    %v1703 = vmul.f32 %v1553, %v1665
    %v1704 = vmul.f32 %v1554, %v1665
    %v1705 = vmul.f32 %v1555, %v1665
    %v1706 = vmul.f32 %v1556, %v1665
    %v1707 = vmul.f32 %v1557, %v1665
    %v1708 = vmul.f32 %v1558, %v1665
    %v1709 = vmul.f32 %v1559, %v1665
    %v1710 = vmul.f32 %v1560, %v1665
    %v1711 = vmul.f32 %v1561, %v1665
    %v1712 = vmul.f32 %v1562, %v1665
    %v1713 = vmul.f32 %v1563, %v1665
    %v1714 = vmul.f32 %v1564, %v1665
    %v1715 = vmul.f32 %v1565, %v1665
    %v1716 = vmul.f32 %v1566, %v1665
    %v1717 = vmul.f32 %v1567, %v1665
    %v1718 = vmul.f32 %v1568, %v1665
    %v1719 = vmul.f32 %v1569, %v1665
    %v1720 = vmul.f32 %v1570, %v1665
    %v1721 = vmul.f32 %v1571, %v1665
    %v1722 = vmul.f32 %v1572, %v1665
    %v1723 = vmul.f32 %v1573, %v1665
    %v1724 = vmul.f32 %v1574, %v1665
    %v1725 = vmul.f32 %v1575, %v1665
    %v1726 = vmul.f32 %v1576, %v1665
    %v1727 = vmul.f32 %v1577, %v1665
    %v1728 = vmul.f32 %v1578, %v1665
    %v1729 = vmul.f32 %v1579, %v1665
    %v1730 = vmul.f32 %v1580, %v1665
    %v1731 = vmul.f32 %v1581, %v1665
    %v1732 = vmul.f32 %v1582, %v1665
    %v1733 = vmul.f32 %v1583, %v1665
    %v1734 = vmul.f32 %v1584, %v1665
    %v1735 = vmul.f32 %v1585, %v1665
    %v1736 = vmul.f32 %v1586, %v1665
    %v1737 = vmul.f32 %v1587, %v1665
    %v1738 = vmul.f32 %v1588, %v1665
    %v1739 = vmul.f32 %v1589, %v1665
    %v1740 = vmul.f32 %v1590, %v1675
    %v1741 = vmul.f32 %v1591, %v1675
    %v1742 = vmul.f32 %v1592, %v1675
    %v1743 = vmul.f32 %v1593, %v1675
    %v1744 = vmul.f32 %v1594, %v1675
    %v1745 = vmul.f32 %v1595, %v1675
    %v1746 = vmul.f32 %v1596, %v1675
    %v1747 = vmul.f32 %v1597, %v1675
    %v1748 = vmul.f32 %v1598, %v1675
    %v1749 = vmul.f32 %v1599, %v1675
    %v1750 = vmul.f32 %v1600, %v1675
    %v1751 = vmul.f32 %v1601, %v1675
    %v1752 = vmul.f32 %v1602, %v1675
    %v1753 = vmul.f32 %v1603, %v1675
    %v1754 = vmul.f32 %v1604, %v1675
    %v1755 = vmul.f32 %v1605, %v1675
    %v1756 = vmul.f32 %v1606, %v1675
    %v1757 = vmul.f32 %v1607, %v1675
    %v1758 = vmul.f32 %v1608, %v1675
    %v1759 = vmul.f32 %v1609, %v1675
    %v1760 = vmul.f32 %v1610, %v1675
    %v1761 = vmul.f32 %v1611, %v1675
    %v1762 = vmul.f32 %v1612, %v1675
    %v1763 = vmul.f32 %v1613, %v1675
    %v1764 = vmul.f32 %v1614, %v1675
    %v1765 = vmul.f32 %v1615, %v1675
    %v1766 = vmul.f32 %v1616, %v1675
    %v1767 = vmul.f32 %v1617, %v1675
    %v1768 = vmul.f32 %v1618, %v1675
    %v1769 = vmul.f32 %v1619, %v1675
    %v1770 = vmul.f32 %v1620, %v1675
    %v1771 = vmul.f32 %v1621, %v1675
    %v1772 = vmul.f32 %v1622, %v1675
    %v1773 = vmul.f32 %v1623, %v1675
    %v1774 = vmul.f32 %v1624, %v1675
    %v1775 = vmul.f32 %v1625, %v1675
    %v1776 = vmul.f32 %v1626, %v1675
    %v1777 = vmul.f32 %v1627, %v1675
    %v1778 = vmul.f32 %v1628, %v1675
    %v1779 = vmul.f32 %v1629, %v1675
    %v1780 = vmul.f32 %v1630, %v1675
    %v1781 = vmul.f32 %v1631, %v1675
    %v1782 = vmul.f32 %v1632, %v1675
    %v1783 = vmul.f32 %v1633, %v1675
    %v1784 = vmul.f32 %v1634, %v1675
    %v1785 = vmul.f32 %v1635, %v1675
    %v1786 = vmul.f32 %v1636, %v1675
    %v1787 = vmul.f32 %v1637, %v1675
    %v1788 = vmul.f32 %v1638, %v1675
    %v1789 = vmul.f32 %v1639, %v1675
    %v1790 = vmul.f32 %v1640, %v1675
    %v1791 = vmul.f32 %v1641, %v1675
    %v1792 = vmul.f32 %v1642, %v1675
    %v1793 = vmul.f32 %v1643, %v1675
    %v1794 = vmul.f32 %v1644, %v1675
    %v1795 = vmul.f32 %v1645, %v1675
    %v1796 = vmul.f32 %v1646, %v1675
    %v1797 = vmul.f32 %v1647, %v1675
    %v1798 = vmul.f32 %v1648, %v1675
    %v1799 = vmul.f32 %v1649, %v1675
    %v1800 = vmul.f32 %v1650, %v1675
    %v1801 = vmul.f32 %v1651, %v1675
    %v1802 = vmul.f32 %v1652, %v1675
    %v1803 = vmul.f32 %v1653, %v1675
    %v1804 = vperm.slane %v79, 1
    %v1805 = vadd.f32 %v1676, %v1804
    %v1806 = vadd.f32 %v1677, %v1804
    %v1807 = vadd.f32 %v1678, %v1804
    %v1808 = vadd.f32 %v1679, %v1804
    %v1809 = vadd.f32 %v1680, %v1804
    %v1810 = vadd.f32 %v1681, %v1804
    %v1811 = vadd.f32 %v1682, %v1804
    %v1812 = vadd.f32 %v1683, %v1804
    %v1813 = vadd.f32 %v1684, %v1804
    %v1814 = vadd.f32 %v1685, %v1804
    %v1815 = vadd.f32 %v1686, %v1804
    %v1816 = vadd.f32 %v1687, %v1804
    %v1817 = vadd.f32 %v1688, %v1804
    %v1818 = vadd.f32 %v1689, %v1804
    %v1819 = vadd.f32 %v1690, %v1804
    %v1820 = vadd.f32 %v1691, %v1804
    %v1821 = vadd.f32 %v1692, %v1804
    %v1822 = vadd.f32 %v1693, %v1804
    %v1823 = vadd.f32 %v1694, %v1804
    %v1824 = vadd.f32 %v1695, %v1804
    %v1825 = vadd.f32 %v1696, %v1804
    %v1826 = vadd.f32 %v1697, %v1804
    %v1827 = vadd.f32 %v1698, %v1804
    %v1828 = vadd.f32 %v1699, %v1804
    %v1829 = vadd.f32 %v1700, %v1804
    %v1830 = vadd.f32 %v1701, %v1804
    %v1831 = vadd.f32 %v1702, %v1804
    %v1832 = vadd.f32 %v1703, %v1804
    %v1833 = vadd.f32 %v1704, %v1804
    %v1834 = vadd.f32 %v1705, %v1804
    %v1835 = vadd.f32 %v1706, %v1804
    %v1836 = vadd.f32 %v1707, %v1804
    %v1837 = vadd.f32 %v1708, %v1804
    %v1838 = vadd.f32 %v1709, %v1804
    %v1839 = vadd.f32 %v1710, %v1804
    %v1840 = vadd.f32 %v1711, %v1804
    %v1841 = vadd.f32 %v1712, %v1804
    %v1842 = vadd.f32 %v1713, %v1804
    %v1843 = vadd.f32 %v1714, %v1804
    %v1844 = vadd.f32 %v1715, %v1804
    %v1845 = vadd.f32 %v1716, %v1804
    %v1846 = vadd.f32 %v1717, %v1804
    %v1847 = vadd.f32 %v1718, %v1804
    %v1848 = vadd.f32 %v1719, %v1804
    %v1849 = vadd.f32 %v1720, %v1804
    %v1850 = vadd.f32 %v1721, %v1804
    %v1851 = vadd.f32 %v1722, %v1804
    %v1852 = vadd.f32 %v1723, %v1804
    %v1853 = vadd.f32 %v1724, %v1804
    %v1854 = vadd.f32 %v1725, %v1804
    %v1855 = vadd.f32 %v1726, %v1804
    %v1856 = vadd.f32 %v1727, %v1804
    %v1857 = vadd.f32 %v1728, %v1804
    %v1858 = vadd.f32 %v1729, %v1804
    %v1859 = vadd.f32 %v1730, %v1804
    %v1860 = vadd.f32 %v1731, %v1804
    %v1861 = vadd.f32 %v1732, %v1804
    %v1862 = vadd.f32 %v1733, %v1804
    %v1863 = vadd.f32 %v1734, %v1804
    %v1864 = vadd.f32 %v1735, %v1804
    %v1865 = vadd.f32 %v1736, %v1804
    %v1866 = vadd.f32 %v1737, %v1804
    %v1867 = vadd.f32 %v1738, %v1804
    %v1868 = vadd.f32 %v1739, %v1804
    %v1869 = vadd.f32 %v1740, %v1804
    %v1870 = vadd.f32 %v1741, %v1804
    %v1871 = vadd.f32 %v1742, %v1804
    %v1872 = vadd.f32 %v1743, %v1804
    %v1873 = vadd.f32 %v1744, %v1804
    %v1874 = vadd.f32 %v1745, %v1804
    %v1875 = vadd.f32 %v1746, %v1804
    %v1876 = vadd.f32 %v1747, %v1804
    %v1877 = vadd.f32 %v1748, %v1804
    %v1878 = vadd.f32 %v1749, %v1804
    %v1879 = vadd.f32 %v1750, %v1804
    %v1880 = vadd.f32 %v1751, %v1804
    %v1881 = vadd.f32 %v1752, %v1804
    %v1882 = vadd.f32 %v1753, %v1804
    %v1883 = vadd.f32 %v1754, %v1804
    %v1884 = vadd.f32 %v1755, %v1804
    %v1885 = vadd.f32 %v1756, %v1804
    %v1886 = vadd.f32 %v1757, %v1804
    %v1887 = vadd.f32 %v1758, %v1804
    %v1888 = vadd.f32 %v1759, %v1804
    %v1889 = vadd.f32 %v1760, %v1804
    %v1890 = vadd.f32 %v1761, %v1804
    %v1891 = vadd.f32 %v1762, %v1804
    %v1892 = vadd.f32 %v1763, %v1804
    %v1893 = vadd.f32 %v1764, %v1804
    %v1894 = vadd.f32 %v1765, %v1804
    %v1895 = vadd.f32 %v1766, %v1804
    %v1896 = vadd.f32 %v1767, %v1804
    %v1897 = vadd.f32 %v1768, %v1804
    %v1898 = vadd.f32 %v1769, %v1804
    %v1899 = vadd.f32 %v1770, %v1804
    %v1900 = vadd.f32 %v1771, %v1804
    %v1901 = vadd.f32 %v1772, %v1804
    %v1902 = vadd.f32 %v1773, %v1804
    %v1903 = vadd.f32 %v1774, %v1804
    %v1904 = vadd.f32 %v1775, %v1804
    %v1905 = vadd.f32 %v1776, %v1804
    %v1906 = vadd.f32 %v1777, %v1804
    %v1907 = vadd.f32 %v1778, %v1804
    %v1908 = vadd.f32 %v1779, %v1804
    %v1909 = vadd.f32 %v1780, %v1804
    %v1910 = vadd.f32 %v1781, %v1804
    %v1911 = vadd.f32 %v1782, %v1804
    %v1912 = vadd.f32 %v1783, %v1804
    %v1913 = vadd.f32 %v1784, %v1804
    %v1914 = vadd.f32 %v1785, %v1804
    %v1915 = vadd.f32 %v1786, %v1804
    %v1916 = vadd.f32 %v1787, %v1804
    %v1917 = vadd.f32 %v1788, %v1804
    %v1918 = vadd.f32 %v1789, %v1804
    %v1919 = vadd.f32 %v1790, %v1804
    %v1920 = vadd.f32 %v1791, %v1804
    %v1921 = vadd.f32 %v1792, %v1804
    %v1922 = vadd.f32 %v1793, %v1804
    %v1923 = vadd.f32 %v1794, %v1804
    %v1924 = vadd.f32 %v1795, %v1804
    %v1925 = vadd.f32 %v1796, %v1804
    %v1926 = vadd.f32 %v1797, %v1804
    %v1927 = vadd.f32 %v1798, %v1804
    %v1928 = vadd.f32 %v1799, %v1804
    %v1929 = vadd.f32 %v1800, %v1804
    %v1930 = vadd.f32 %v1801, %v1804
    %v1931 = vadd.f32 %v1802, %v1804
    %v1932 = vadd.f32 %v1803, %v1804
    %v1933 = vmax.f32 %v1805, 0.0
    %v1934 = vmax.f32 %v1806, 0.0
    %v1935 = vmax.f32 %v1807, 0.0
    %v1936 = vmax.f32 %v1808, 0.0
    %v1937 = vmax.f32 %v1809, 0.0
    %v1938 = vmax.f32 %v1810, 0.0
    %v1939 = vmax.f32 %v1811, 0.0
    %v1940 = vmax.f32 %v1812, 0.0
    %v1941 = vmax.f32 %v1813, 0.0
    %v1942 = vmax.f32 %v1814, 0.0
    %v1943 = vmax.f32 %v1815, 0.0
    %v1944 = vmax.f32 %v1816, 0.0
    %v1945 = vmax.f32 %v1817, 0.0
    %v1946 = vmax.f32 %v1818, 0.0
    %v1947 = vmax.f32 %v1819, 0.0
    %v1948 = vmax.f32 %v1820, 0.0
    %v1949 = vmax.f32 %v1821, 0.0
    %v1950 = vmax.f32 %v1822, 0.0
    %v1951 = vmax.f32 %v1823, 0.0
    %v1952 = vmax.f32 %v1824, 0.0
    %v1953 = vmax.f32 %v1825, 0.0
    %v1954 = vmax.f32 %v1826, 0.0
    %v1955 = vmax.f32 %v1827, 0.0
    %v1956 = vmax.f32 %v1828, 0.0
    %v1957 = vmax.f32 %v1829, 0.0
    %v1958 = vmax.f32 %v1830, 0.0
    %v1959 = vmax.f32 %v1831, 0.0
    %v1960 = vmax.f32 %v1832, 0.0
    %v1961 = vmax.f32 %v1833, 0.0
    %v1962 = vmax.f32 %v1834, 0.0
    %v1963 = vmax.f32 %v1835, 0.0
    %v1964 = vmax.f32 %v1836, 0.0
    %v1965 = vmax.f32 %v1837, 0.0
    %v1966 = vmax.f32 %v1838, 0.0
    %v1967 = vmax.f32 %v1839, 0.0
    %v1968 = vmax.f32 %v1840, 0.0
    %v1969 = vmax.f32 %v1841, 0.0
    %v1970 = vmax.f32 %v1842, 0.0
    %v1971 = vmax.f32 %v1843, 0.0
    %v1972 = vmax.f32 %v1844, 0.0
    %v1973 = vmax.f32 %v1845, 0.0
    %v1974 = vmax.f32 %v1846, 0.0
    %v1975 = vmax.f32 %v1847, 0.0
    %v1976 = vmax.f32 %v1848, 0.0
    %v1977 = vmax.f32 %v1849, 0.0
    %v1978 = vmax.f32 %v1850, 0.0
    %v1979 = vmax.f32 %v1851, 0.0
    %v1980 = vmax.f32 %v1852, 0.0
    %v1981 = vmax.f32 %v1853, 0.0
    %v1982 = vmax.f32 %v1854, 0.0
    %v1983 = vmax.f32 %v1855, 0.0
    %v1984 = vmax.f32 %v1856, 0.0
    %v1985 = vmax.f32 %v1857, 0.0
    %v1986 = vmax.f32 %v1858, 0.0
    %v1987 = vmax.f32 %v1859, 0.0
    %v1988 = vmax.f32 %v1860, 0.0
    %v1989 = vmax.f32 %v1861, 0.0
    %v1990 = vmax.f32 %v1862, 0.0
    %v1991 = vmax.f32 %v1863, 0.0
    %v1992 = vmax.f32 %v1864, 0.0
    %v1993 = vmax.f32 %v1865, 0.0
    %v1994 = vmax.f32 %v1866, 0.0
    %v1995 = vmax.f32 %v1867, 0.0
    %v1996 = vmax.f32 %v1868, 0.0
    %v1997 = vmax.f32 %v1869, 0.0
    %v1998 = vmax.f32 %v1870, 0.0
    %v1999 = vmax.f32 %v1871, 0.0
    %v2000 = vmax.f32 %v1872, 0.0
    %v2001 = vmax.f32 %v1873, 0.0
    %v2002 = vmax.f32 %v1874, 0.0
    %v2003 = vmax.f32 %v1875, 0.0
    %v2004 = vmax.f32 %v1876, 0.0
    %v2005 = vmax.f32 %v1877, 0.0
    %v2006 = vmax.f32 %v1878, 0.0
    %v2007 = vmax.f32 %v1879, 0.0
    %v2008 = vmax.f32 %v1880, 0.0
    %v2009 = vmax.f32 %v1881, 0.0
    %v2010 = vmax.f32 %v1882, 0.0
    %v2011 = vmax.f32 %v1883, 0.0
    %v2012 = vmax.f32 %v1884, 0.0
    %v2013 = vmax.f32 %v1885, 0.0
    %v2014 = vmax.f32 %v1886, 0.0
    %v2015 = vmax.f32 %v1887, 0.0
    %v2016 = vmax.f32 %v1888, 0.0
    %v2017 = vmax.f32 %v1889, 0.0
    %v2018 = vmax.f32 %v1890, 0.0
    %v2019 = vmax.f32 %v1891, 0.0
    %v2020 = vmax.f32 %v1892, 0.0
    %v2021 = vmax.f32 %v1893, 0.0
    %v2022 = vmax.f32 %v1894, 0.0
    %v2023 = vmax.f32 %v1895, 0.0
    %v2024 = vmax.f32 %v1896, 0.0
    %v2025 = vmax.f32 %v1897, 0.0
    %v2026 = vmax.f32 %v1898, 0.0
    %v2027 = vmax.f32 %v1899, 0.0
    %v2028 = vmax.f32 %v1900, 0.0
    %v2029 = vmax.f32 %v1901, 0.0
    %v2030 = vmax.f32 %v1902, 0.0
    %v2031 = vmax.f32 %v1903, 0.0
    %v2032 = vmax.f32 %v1904, 0.0
    %v2033 = vmax.f32 %v1905, 0.0
    %v2034 = vmax.f32 %v1906, 0.0
    %v2035 = vmax.f32 %v1907, 0.0
    %v2036 = vmax.f32 %v1908, 0.0
    %v2037 = vmax.f32 %v1909, 0.0
    %v2038 = vmax.f32 %v1910, 0.0
    %v2039 = vmax.f32 %v1911, 0.0
    %v2040 = vmax.f32 %v1912, 0.0
    %v2041 = vmax.f32 %v1913, 0.0
    %v2042 = vmax.f32 %v1914, 0.0
    %v2043 = vmax.f32 %v1915, 0.0
    %v2044 = vmax.f32 %v1916, 0.0
    %v2045 = vmax.f32 %v1917, 0.0
    %v2046 = vmax.f32 %v1918, 0.0
    %v2047 = vmax.f32 %v1919, 0.0
    %v2048 = vmax.f32 %v1920, 0.0
    %v2049 = vmax.f32 %v1921, 0.0
    %v2050 = vmax.f32 %v1922, 0.0
    %v2051 = vmax.f32 %v1923, 0.0
    %v2052 = vmax.f32 %v1924, 0.0
    %v2053 = vmax.f32 %v1925, 0.0
    %v2054 = vmax.f32 %v1926, 0.0
    %v2055 = vmax.f32 %v1927, 0.0
    %v2056 = vmax.f32 %v1928, 0.0
    %v2057 = vmax.f32 %v1929, 0.0
    %v2058 = vmax.f32 %v1930, 0.0
    %v2059 = vmax.f32 %v1931, 0.0
    %v2060 = vmax.f32 %v1932, 0.0
    %v2061 = vadd.f32 %v1933, %v1934
    %v2062 = vadd.f32 %v2061, %v1935
    %v2063 = vadd.f32 %v2062, %v1936
    %v2064 = vadd.f32 %v2063, %v1937
    %v2065 = vadd.f32 %v2064, %v1938
    %v2066 = vadd.f32 %v2065, %v1939
    %v2067 = vadd.f32 %v2066, %v1940
    %v2068 = vrot.slane %v2067, 4
    %v2069 = vadd.f32 %v2067, %v2068
    %v2070 = vrot.slane %v2069, 2
    %v2071 = vadd.f32 %v2069, %v2070
    %v2072 = vrot.slane %v2071, 1
    %v2073 = vadd.f32 %v2071, %v2072
    %v2074 = vadd.f32 %v1941, %v1942
    %v2075 = vadd.f32 %v2074, %v1943
    %v2076 = vadd.f32 %v2075, %v1944
    %v2077 = vadd.f32 %v2076, %v1945
    %v2078 = vadd.f32 %v2077, %v1946
    %v2079 = vadd.f32 %v2078, %v1947
    %v2080 = vadd.f32 %v2079, %v1948
    %v2081 = vrot.slane %v2080, 4
    %v2082 = vadd.f32 %v2080, %v2081
    %v2083 = vrot.slane %v2082, 2
    %v2084 = vadd.f32 %v2082, %v2083
    %v2085 = vrot.slane %v2084, 1
    %v2086 = vadd.f32 %v2084, %v2085
    %v2087 = vadd.f32 %v1949, %v1950
    %v2088 = vadd.f32 %v2087, %v1951
    %v2089 = vadd.f32 %v2088, %v1952
    %v2090 = vadd.f32 %v2089, %v1953
    %v2091 = vadd.f32 %v2090, %v1954
    %v2092 = vadd.f32 %v2091, %v1955
    %v2093 = vadd.f32 %v2092, %v1956
    %v2094 = vrot.slane %v2093, 4
    %v2095 = vadd.f32 %v2093, %v2094
    %v2096 = vrot.slane %v2095, 2
    %v2097 = vadd.f32 %v2095, %v2096
    %v2098 = vrot.slane %v2097, 1
    %v2099 = vadd.f32 %v2097, %v2098
    %v2100 = vadd.f32 %v1957, %v1958
    %v2101 = vadd.f32 %v2100, %v1959
    %v2102 = vadd.f32 %v2101, %v1960
    %v2103 = vadd.f32 %v2102, %v1961
    %v2104 = vadd.f32 %v2103, %v1962
    %v2105 = vadd.f32 %v2104, %v1963
    %v2106 = vadd.f32 %v2105, %v1964
    %v2107 = vrot.slane %v2106, 4
    %v2108 = vadd.f32 %v2106, %v2107
    %v2109 = vrot.slane %v2108, 2
    %v2110 = vadd.f32 %v2108, %v2109
    %v2111 = vrot.slane %v2110, 1
    %v2112 = vadd.f32 %v2110, %v2111
    %v2113 = vadd.f32 %v1965, %v1966
    %v2114 = vadd.f32 %v2113, %v1967
    %v2115 = vadd.f32 %v2114, %v1968
    %v2116 = vadd.f32 %v2115, %v1969
    %v2117 = vadd.f32 %v2116, %v1970
    %v2118 = vadd.f32 %v2117, %v1971
    %v2119 = vadd.f32 %v2118, %v1972
    %v2120 = vrot.slane %v2119, 4
    %v2121 = vadd.f32 %v2119, %v2120
    %v2122 = vrot.slane %v2121, 2
    %v2123 = vadd.f32 %v2121, %v2122
    %v2124 = vrot.slane %v2123, 1
    %v2125 = vadd.f32 %v2123, %v2124
    %v2126 = vadd.f32 %v1973, %v1974
    %v2127 = vadd.f32 %v2126, %v1975
    %v2128 = vadd.f32 %v2127, %v1976
    %v2129 = vadd.f32 %v2128, %v1977
    %v2130 = vadd.f32 %v2129, %v1978
    %v2131 = vadd.f32 %v2130, %v1979
    %v2132 = vadd.f32 %v2131, %v1980
    %v2133 = vrot.slane %v2132, 4
    %v2134 = vadd.f32 %v2132, %v2133
    %v2135 = vrot.slane %v2134, 2
    %v2136 = vadd.f32 %v2134, %v2135
    %v2137 = vrot.slane %v2136, 1
    %v2138 = vadd.f32 %v2136, %v2137
    %v2139 = vadd.f32 %v1981, %v1982
    %v2140 = vadd.f32 %v2139, %v1983
    %v2141 = vadd.f32 %v2140, %v1984
    %v2142 = vadd.f32 %v2141, %v1985
    %v2143 = vadd.f32 %v2142, %v1986
    %v2144 = vadd.f32 %v2143, %v1987
    %v2145 = vadd.f32 %v2144, %v1988
    %v2146 = vrot.slane %v2145, 4
    %v2147 = vadd.f32 %v2145, %v2146
    %v2148 = vrot.slane %v2147, 2
    %v2149 = vadd.f32 %v2147, %v2148
    %v2150 = vrot.slane %v2149, 1
    %v2151 = vadd.f32 %v2149, %v2150
    %v2152 = vadd.f32 %v1989, %v1990
    %v2153 = vadd.f32 %v2152, %v1991
    %v2154 = vadd.f32 %v2153, %v1992
    %v2155 = vadd.f32 %v2154, %v1993
    %v2156 = vadd.f32 %v2155, %v1994
    %v2157 = vadd.f32 %v2156, %v1995
    %v2158 = vadd.f32 %v2157, %v1996
    %v2159 = vrot.slane %v2158, 4
    %v2160 = vadd.f32 %v2158, %v2159
    %v2161 = vrot.slane %v2160, 2
    %v2162 = vadd.f32 %v2160, %v2161
    %v2163 = vrot.slane %v2162, 1
    %v2164 = vadd.f32 %v2162, %v2163
    %v2165 = vadd.f32 %v1997, %v1998
    %v2166 = vadd.f32 %v2165, %v1999
    %v2167 = vadd.f32 %v2166, %v2000
    %v2168 = vadd.f32 %v2167, %v2001
    %v2169 = vadd.f32 %v2168, %v2002
    %v2170 = vadd.f32 %v2169, %v2003
    %v2171 = vadd.f32 %v2170, %v2004
    %v2172 = vrot.slane %v2171, 4
    %v2173 = vadd.f32 %v2171, %v2172
    %v2174 = vrot.slane %v2173, 2
    %v2175 = vadd.f32 %v2173, %v2174
    %v2176 = vrot.slane %v2175, 1
    %v2177 = vadd.f32 %v2175, %v2176
    %v2178 = vadd.f32 %v2005, %v2006
    %v2179 = vadd.f32 %v2178, %v2007
    %v2180 = vadd.f32 %v2179, %v2008
    %v2181 = vadd.f32 %v2180, %v2009
    %v2182 = vadd.f32 %v2181, %v2010
    %v2183 = vadd.f32 %v2182, %v2011
    %v2184 = vadd.f32 %v2183, %v2012
    %v2185 = vrot.slane %v2184, 4
    %v2186 = vadd.f32 %v2184, %v2185
    %v2187 = vrot.slane %v2186, 2
    %v2188 = vadd.f32 %v2186, %v2187
    %v2189 = vrot.slane %v2188, 1
    %v2190 = vadd.f32 %v2188, %v2189
    %v2191 = vadd.f32 %v2013, %v2014
    %v2192 = vadd.f32 %v2191, %v2015
    %v2193 = vadd.f32 %v2192, %v2016
    %v2194 = vadd.f32 %v2193, %v2017
    %v2195 = vadd.f32 %v2194, %v2018
    %v2196 = vadd.f32 %v2195, %v2019
    %v2197 = vadd.f32 %v2196, %v2020
    %v2198 = vrot.slane %v2197, 4
    %v2199 = vadd.f32 %v2197, %v2198
    %v2200 = vrot.slane %v2199, 2
    %v2201 = vadd.f32 %v2199, %v2200
    %v2202 = vrot.slane %v2201, 1
    %v2203 = vadd.f32 %v2201, %v2202
    %v2204 = vadd.f32 %v2021, %v2022
    %v2205 = vadd.f32 %v2204, %v2023
    %v2206 = vadd.f32 %v2205, %v2024
    %v2207 = vadd.f32 %v2206, %v2025
    %v2208 = vadd.f32 %v2207, %v2026
    %v2209 = vadd.f32 %v2208, %v2027
    %v2210 = vadd.f32 %v2209, %v2028
    %v2211 = vrot.slane %v2210, 4
    %v2212 = vadd.f32 %v2210, %v2211
    %v2213 = vrot.slane %v2212, 2
    %v2214 = vadd.f32 %v2212, %v2213
    %v2215 = vrot.slane %v2214, 1
    %v2216 = vadd.f32 %v2214, %v2215
    %v2217 = vadd.f32 %v2029, %v2030
    %v2218 = vadd.f32 %v2217, %v2031
    %v2219 = vadd.f32 %v2218, %v2032
    %v2220 = vadd.f32 %v2219, %v2033
    %v2221 = vadd.f32 %v2220, %v2034
    %v2222 = vadd.f32 %v2221, %v2035
    %v2223 = vadd.f32 %v2222, %v2036
    %v2224 = vrot.slane %v2223, 4
    %v2225 = vadd.f32 %v2223, %v2224
    %v2226 = vrot.slane %v2225, 2
    %v2227 = vadd.f32 %v2225, %v2226
    %v2228 = vrot.slane %v2227, 1
    %v2229 = vadd.f32 %v2227, %v2228
    %v2230 = vadd.f32 %v2037, %v2038
    %v2231 = vadd.f32 %v2230, %v2039
    %v2232 = vadd.f32 %v2231, %v2040
    %v2233 = vadd.f32 %v2232, %v2041
    %v2234 = vadd.f32 %v2233, %v2042
    %v2235 = vadd.f32 %v2234, %v2043
    %v2236 = vadd.f32 %v2235, %v2044
    %v2237 = vrot.slane %v2236, 4
    %v2238 = vadd.f32 %v2236, %v2237
    %v2239 = vrot.slane %v2238, 2
    %v2240 = vadd.f32 %v2238, %v2239
    %v2241 = vrot.slane %v2240, 1
    %v2242 = vadd.f32 %v2240, %v2241
    %v2243 = vadd.f32 %v2045, %v2046
    %v2244 = vadd.f32 %v2243, %v2047
    %v2245 = vadd.f32 %v2244, %v2048
    %v2246 = vadd.f32 %v2245, %v2049
    %v2247 = vadd.f32 %v2246, %v2050
    %v2248 = vadd.f32 %v2247, %v2051
    %v2249 = vadd.f32 %v2248, %v2052
    %v2250 = vrot.slane %v2249, 4
    %v2251 = vadd.f32 %v2249, %v2250
    %v2252 = vrot.slane %v2251, 2
    %v2253 = vadd.f32 %v2251, %v2252
    %v2254 = vrot.slane %v2253, 1
    %v2255 = vadd.f32 %v2253, %v2254
    %v2256 = vadd.f32 %v2053, %v2054
    %v2257 = vadd.f32 %v2256, %v2055
    %v2258 = vadd.f32 %v2257, %v2056
    %v2259 = vadd.f32 %v2258, %v2057
    %v2260 = vadd.f32 %v2259, %v2058
    %v2261 = vadd.f32 %v2260, %v2059
    %v2262 = vadd.f32 %v2261, %v2060
    %v2263 = vrot.slane %v2262, 4
    %v2264 = vadd.f32 %v2262, %v2263
    %v2265 = vrot.slane %v2264, 2
    %v2266 = vadd.f32 %v2264, %v2265
    %v2267 = vrot.slane %v2266, 1
    %v2268 = vadd.f32 %v2266, %v2267
    %v2269 = vrcp.pop 64.0
    %v2270 = vmul.f32 64.0, %v2269
    %v2271 = vsub.f32 1.0, %v2270
    %v2272 = vmul.f32 %v2269, %v2271
    %v2273 = vadd.f32 %v2269, %v2272
    %vm2274 = vweird.f32 %v2269
    %v2275 = vsel %vm2274, %v2269, %v2273
    %v2276 = vmul.f32 %v2073, %v2275
    %v2277 = vmul.f32 %v2086, %v2275
    %v2278 = vmul.f32 %v2099, %v2275
    %v2279 = vmul.f32 %v2112, %v2275
    %v2280 = vmul.f32 %v2125, %v2275
    %v2281 = vmul.f32 %v2138, %v2275
    %v2282 = vmul.f32 %v2151, %v2275
    %v2283 = vmul.f32 %v2164, %v2275
    %v2284 = vmul.f32 %v2177, %v2275
    %v2285 = vmul.f32 %v2190, %v2275
    %v2286 = vmul.f32 %v2203, %v2275
    %v2287 = vmul.f32 %v2216, %v2275
    %v2288 = vmul.f32 %v2229, %v2275
    %v2289 = vmul.f32 %v2242, %v2275
    %v2290 = vmul.f32 %v2255, %v2275
    %v2291 = vmul.f32 %v2268, %v2275
    %v2292 = vpack.c.bf16 %v2276, %v2276
    %v2293 = vpack.c.bf16 %v2277, %v2277
    %v2294 = vpack.c.bf16 %v2278, %v2278
    %v2295 = vpack.c.bf16 %v2279, %v2279
    %v2296 = vpack.c.bf16 %v2280, %v2280
    %v2297 = vpack.c.bf16 %v2281, %v2281
    %v2298 = vpack.c.bf16 %v2282, %v2282
    %v2299 = vpack.c.bf16 %v2283, %v2283
    %v2300 = vpack.c.bf16 %v2284, %v2284
    %v2301 = vpack.c.bf16 %v2285, %v2285
    %v2302 = vpack.c.bf16 %v2286, %v2286
    %v2303 = vpack.c.bf16 %v2287, %v2287
    %v2304 = vpack.c.bf16 %v2288, %v2288
    %v2305 = vpack.c.bf16 %v2289, %v2289
    %v2306 = vpack.c.bf16 %v2290, %v2290
    %v2307 = vpack.c.bf16 %v2291, %v2291
    %v2308 = vld [vmem:[#allocation8] sm:$0xf]
    %v2309 = vld [vmem:[#allocation8 + $0x4] sm:$0xf]
    %v2310 = vld [vmem:[#allocation8 + $0x8] sm:$0xf]
    %v2311 = vld [vmem:[#allocation8 + $0xc] sm:$0xf]
    %v2312 = vld [vmem:[#allocation8 + $0x10] sm:$0xf]
    %v2313 = vld [vmem:[#allocation8 + $0x14] sm:$0xf]
    %v2314 = vld [vmem:[#allocation8 + $0x18] sm:$0xf]
    %v2315 = vld [vmem:[#allocation8 + $0x1c] sm:$0xf]
    %v2316 = vld [vmem:[#allocation8 + $0x20] sm:$0xf]
    %v2317 = vld [vmem:[#allocation8 + $0x24] sm:$0xf]
    %v2318 = vld [vmem:[#allocation8 + $0x28] sm:$0xf]
    %v2319 = vld [vmem:[#allocation8 + $0x2c] sm:$0xf]
    %v2320 = vld [vmem:[#allocation8 + $0x30] sm:$0xf]
    %v2321 = vld [vmem:[#allocation8 + $0x34] sm:$0xf]
    %v2322 = vld [vmem:[#allocation8 + $0x38] sm:$0xf]
    %v2323 = vld [vmem:[#allocation8 + $0x3c] sm:$0xf]
    %v2340 = vunpack.c.l.b16 %v2292
    %v2341 = vunpack.c.l.b16 %v2293
    %v2342 = vunpack.c.l.b16 %v2294
    %v2343 = vunpack.c.l.b16 %v2295
    %v2344 = vunpack.c.l.b16 %v2296
    %v2345 = vunpack.c.l.b16 %v2297
    %v2346 = vunpack.c.l.b16 %v2298
    %v2347 = vunpack.c.l.b16 %v2299
    %v2348 = vunpack.c.l.b16 %v2300
    %v2349 = vunpack.c.l.b16 %v2301
    %v2350 = vunpack.c.l.b16 %v2302
    %v2351 = vunpack.c.l.b16 %v2303
    %v2352 = vunpack.c.l.b16 %v2304
    %v2353 = vunpack.c.l.b16 %v2305
    %v2354 = vunpack.c.l.b16 %v2306
    %v2355 = vunpack.c.l.b16 %v2307
    %vm2356 = vcmask 1041409
    %v2357 = vsel %vm2356, %v2341, %v2340
    %vm2358 = vcmask 1042434
    %v2359 = vsel %vm2358, %v2342, %v2357
    %vm2360 = vcmask 1043459
    %v2361 = vsel %vm2360, %v2343, %v2359
    %vm2362 = vcmask 1044484
    %v2363 = vsel %vm2362, %v2344, %v2361
    %vm2364 = vcmask 1045509
    %v2365 = vsel %vm2364, %v2345, %v2363
    %vm2366 = vcmask 1046534
    %v2367 = vsel %vm2366, %v2346, %v2365
    %vm2368 = vcmask 1047559
    %v2369 = vsel %vm2368, %v2347, %v2367
    %v2370 = vsel %vm2356, %v2349, %v2348
    %v2371 = vsel %vm2358, %v2350, %v2370
    %v2372 = vsel %vm2360, %v2351, %v2371
    %v2373 = vsel %vm2362, %v2352, %v2372
    %v2374 = vsel %vm2364, %v2353, %v2373
    %v2375 = vsel %vm2366, %v2354, %v2374
    %v2376 = vsel %vm2368, %v2355, %v2375
    %v2377 = vpack.c.b16 %v2376, %v2369
    %v2395 = vunpack.c.l.b16 %v2308
    %v2396 = vunpack.c.l.b16 %v2309
    %v2397 = vunpack.c.l.b16 %v2310
    %v2398 = vunpack.c.l.b16 %v2311
    %v2399 = vunpack.c.l.b16 %v2312
    %v2400 = vunpack.c.l.b16 %v2313
    %v2401 = vunpack.c.l.b16 %v2314
    %v2402 = vunpack.c.l.b16 %v2315
    %v2403 = vunpack.c.l.b16 %v2316
    %v2404 = vunpack.c.l.b16 %v2317
    %v2405 = vunpack.c.l.b16 %v2318
    %v2406 = vunpack.c.l.b16 %v2319
    %v2407 = vunpack.c.l.b16 %v2320
    %v2408 = vunpack.c.l.b16 %v2321
    %v2409 = vunpack.c.l.b16 %v2322
    %v2410 = vunpack.c.l.b16 %v2323
    %v2411 = vpack.c.b16 %v2396, %v2395
    %v2412 = vpack.c.b16 %v2398, %v2397
    %v2413 = vpack.c.b16 %v2400, %v2399
    %v2414 = vpack.c.b16 %v2402, %v2401
    %v2415 = vpack.c.b16 %v2404, %v2403
    %v2416 = vpack.c.b16 %v2406, %v2405
    %v2417 = vpack.c.b16 %v2408, %v2407
    %v2418 = vpack.c.b16 %v2410, %v2409
    %2427 = vmatpush.bf16.msra.mxu0 %v2418
    %2428 = vmatpush.bf16.msra.mxu0 %v2417
    %2429 = vmatpush.bf16.msra.mxu0 %v2416
    %2430 = vmatpush.bf16.msra.mxu0 %v2415
    %2431 = vmatpush.bf16.msra.mxu0 %v2414
    %2432 = vmatpush.bf16.msra.mxu0 %v2413
    %2433 = vmatpush.bf16.msra.mxu0 %v2412
    %2434 = vmatpush.bf16.msra.mxu0 %v2411
    %2435 = vmatmul.bf16.gmra.mxu0 %v2377
    %v2436 = vpop.f32.mrf.mxu0
    %v2437 = vadd.f32 0.0, %v2436
    %v2438 = vpop.f32.mrf.mxu0
    %v2439 = vadd.f32 0.0, %v2438
    %2440 = vdwg.mxu0
    %v2441 = vrot.slane %v2437, 4
    %v2442 = vadd.f32 %v2437, %v2441
    %v2443 = vrot.slane %v2442, 2
    %v2444 = vadd.f32 %v2442, %v2443
    %v2445 = vrot.slane %v2444, 1
    %v2446 = vadd.f32 %v2444, %v2445
    %v2447 = vrot.slane %v2439, 4
    %v2448 = vadd.f32 %v2439, %v2447
    %v2449 = vrot.slane %v2448, 2
    %v2450 = vadd.f32 %v2448, %v2449
    %v2451 = vrot.slane %v2450, 1
    %v2452 = vadd.f32 %v2450, %v2451
    %v2453 = vmul.f32 %v2446, 0.125
    %v2454 = vmul.f32 %v2452, 0.125
    %v2455 = vmul.f32 %v2437, %v2437
    %v2456 = vmul.f32 %v2439, %v2439
    %v2457 = vrot.slane %v2455, 4
    %v2458 = vadd.f32 %v2455, %v2457
    %v2459 = vrot.slane %v2458, 2
    %v2460 = vadd.f32 %v2458, %v2459
    %v2461 = vrot.slane %v2460, 1
    %v2462 = vadd.f32 %v2460, %v2461
    %v2463 = vrot.slane %v2456, 4
    %v2464 = vadd.f32 %v2456, %v2463
    %v2465 = vrot.slane %v2464, 2
    %v2466 = vadd.f32 %v2464, %v2465
    %v2467 = vrot.slane %v2466, 1
    %v2468 = vadd.f32 %v2466, %v2467
    %v2469 = vmul.f32 %v2462, 0.125
    %v2470 = vmul.f32 %v2468, 0.125
    %v2471 = vmul.f32 %v2453, %v2453
    %v2472 = vmul.f32 %v2454, %v2454
    %v2473 = vsub.f32 %v2469, %v2471
    %v2474 = vsub.f32 %v2470, %v2472
    %v2475 = vsub.f32 %v2437, %v2453
    %v2476 = vsub.f32 %v2439, %v2454
    %v2477 = vperm.slane %v79, 2
    %v2478 = vmul.f32 %v2477, %v2475
    %v2479 = vmul.f32 %v2477, %v2476
    %v2480 = vadd.f32 %v2473, 1e-05
    %v2481 = vadd.f32 %v2474, 1e-05
    %v2482 = vrsqrt.pop %v2480
    %v2483 = vmul.f32 %v2482, %v2480
    %v2484 = vmul.f32 %v2483, %v2482
    %v2485 = vmul.f32 0.5, %v2484
    %v2486 = vsub.f32 1.5, %v2485
    %v2487 = vmul.f32 %v2482, %v2486
    %vm2488 = vweird.f32 %v2480
    %vm2489 = vweird.f32 %v2482
    %vm2490 = vmor %vm2488, %vm2489
    %v2491 = vsel %vm2490, %v2482, %v2487
    %v2492 = vrsqrt.pop %v2481
    %v2493 = vmul.f32 %v2492, %v2481
    %v2494 = vmul.f32 %v2493, %v2492
    %v2495 = vmul.f32 0.5, %v2494
    %v2496 = vsub.f32 1.5, %v2495
    %v2497 = vmul.f32 %v2492, %v2496
    %vm2498 = vweird.f32 %v2481
    %vm2499 = vweird.f32 %v2492
    %vm2500 = vmor %vm2498, %vm2499
    %v2501 = vsel %vm2500, %v2492, %v2497
    %v2502 = vmul.f32 %v2478, %v2491
    %v2503 = vmul.f32 %v2479, %v2501
    %v2504 = vperm.slane %v79, 3
    %v2505 = vadd.f32 %v2502, %v2504
    %v2506 = vadd.f32 %v2503, %v2504
    %v2507 = vmax.f32 %v2505, 0.0
    %v2508 = vmax.f32 %v2506, 0.0
    %v2509 = vpack.c.bf16 %v2508, %v2507
    %s2510 = scalar_lea.vmem [#allocation8], 64
    %v2511 = vld [vmem:[%s2510] sm:$0xf]
    %v2512 = vld [vmem:[%s2510 + $0x4] sm:$0xf]
    %v2513 = vld [vmem:[%s2510 + $0x8] sm:$0xf]
    %v2514 = vld [vmem:[%s2510 + $0xc] sm:$0xf]
    %v2515 = vld [vmem:[%s2510 + $0x10] sm:$0xf]
    %v2516 = vld [vmem:[%s2510 + $0x14] sm:$0xf]
    %v2517 = vld [vmem:[%s2510 + $0x18] sm:$0xf]
    %v2518 = vld [vmem:[%s2510 + $0x1c] sm:$0xf]
    %v2519 = vld [vmem:[%s2510 + $0x20] sm:$0xf]
    %v2520 = vld [vmem:[%s2510 + $0x24] sm:$0xf]
    %v2521 = vld [vmem:[%s2510 + $0x28] sm:$0xf]
    %v2522 = vld [vmem:[%s2510 + $0x2c] sm:$0xf]
    %v2523 = vld [vmem:[%s2510 + $0x30] sm:$0xf]
    %v2524 = vld [vmem:[%s2510 + $0x34] sm:$0xf]
    %v2525 = vld [vmem:[%s2510 + $0x38] sm:$0xf]
    %v2526 = vld [vmem:[%s2510 + $0x3c] sm:$0xf]
    %v2543 = vunpack.c.l.b16 %v2511
    %v2544 = vunpack.c.l.b16 %v2512
    %v2545 = vunpack.c.l.b16 %v2513
    %v2546 = vunpack.c.l.b16 %v2514
    %v2547 = vunpack.c.l.b16 %v2515
    %v2548 = vunpack.c.l.b16 %v2516
    %v2549 = vunpack.c.l.b16 %v2517
    %v2550 = vunpack.c.l.b16 %v2518
    %v2551 = vunpack.c.l.b16 %v2519
    %v2552 = vunpack.c.l.b16 %v2520
    %v2553 = vunpack.c.l.b16 %v2521
    %v2554 = vunpack.c.l.b16 %v2522
    %v2555 = vunpack.c.l.b16 %v2523
    %v2556 = vunpack.c.l.b16 %v2524
    %v2557 = vunpack.c.l.b16 %v2525
    %v2558 = vunpack.c.l.b16 %v2526
    %v2559 = vpack.c.b16 %v2544, %v2543
    %v2560 = vpack.c.b16 %v2546, %v2545
    %v2561 = vpack.c.b16 %v2548, %v2547
    %v2562 = vpack.c.b16 %v2550, %v2549
    %v2563 = vpack.c.b16 %v2552, %v2551
    %v2564 = vpack.c.b16 %v2554, %v2553
    %v2565 = vpack.c.b16 %v2556, %v2555
    %v2566 = vpack.c.b16 %v2558, %v2557
    %2575 = vmatpush.bf16.msra.mxu0 %v2566
    %2576 = vmatpush.bf16.msra.mxu0 %v2565
    %2577 = vmatpush.bf16.msra.mxu0 %v2564
    %2578 = vmatpush.bf16.msra.mxu0 %v2563
    %2579 = vmatpush.bf16.msra.mxu0 %v2562
    %2580 = vmatpush.bf16.msra.mxu0 %v2561
    %2581 = vmatpush.bf16.msra.mxu0 %v2560
    %2582 = vmatpush.bf16.msra.mxu0 %v2559
    %2583 = vmatmul.bf16.gmra.mxu0 %v2509
    %v2584 = vpop.f32.mrf.mxu0
    %v2585 = vadd.f32 0.0, %v2584
    %v2586 = vpop.f32.mrf.mxu0
    %v2587 = vadd.f32 0.0, %v2586
    %2588 = vdwg.mxu0
    %v2589 = vrot.slane %v2585, 4
    %v2590 = vadd.f32 %v2585, %v2589
    %v2591 = vrot.slane %v2590, 2
    %v2592 = vadd.f32 %v2590, %v2591
    %v2593 = vrot.slane %v2592, 1
    %v2594 = vadd.f32 %v2592, %v2593
    %v2595 = vrot.slane %v2587, 4
    %v2596 = vadd.f32 %v2587, %v2595
    %v2597 = vrot.slane %v2596, 2
    %v2598 = vadd.f32 %v2596, %v2597
    %v2599 = vrot.slane %v2598, 1
    %v2600 = vadd.f32 %v2598, %v2599
    %v2601 = vmul.f32 %v2594, 0.125
    %v2602 = vmul.f32 %v2600, 0.125
    %v2603 = vmul.f32 %v2585, %v2585
    %v2604 = vmul.f32 %v2587, %v2587
    %v2605 = vrot.slane %v2603, 4
    %v2606 = vadd.f32 %v2603, %v2605
    %v2607 = vrot.slane %v2606, 2
    %v2608 = vadd.f32 %v2606, %v2607
    %v2609 = vrot.slane %v2608, 1
    %v2610 = vadd.f32 %v2608, %v2609
    %v2611 = vrot.slane %v2604, 4
    %v2612 = vadd.f32 %v2604, %v2611
    %v2613 = vrot.slane %v2612, 2
    %v2614 = vadd.f32 %v2612, %v2613
    %v2615 = vrot.slane %v2614, 1
    %v2616 = vadd.f32 %v2614, %v2615
    %v2617 = vmul.f32 %v2610, 0.125
    %v2618 = vmul.f32 %v2616, 0.125
    %v2619 = vmul.f32 %v2601, %v2601
    %v2620 = vmul.f32 %v2602, %v2602
    %v2621 = vsub.f32 %v2617, %v2619
    %v2622 = vsub.f32 %v2618, %v2620
    %v2623 = vsub.f32 %v2585, %v2601
    %v2624 = vsub.f32 %v2587, %v2602
    %v2625 = vperm.slane %v79, 4
    %v2626 = vmul.f32 %v2625, %v2623
    %v2627 = vmul.f32 %v2625, %v2624
    %v2628 = vadd.f32 %v2621, 1e-05
    %v2629 = vadd.f32 %v2622, 1e-05
    %v2630 = vrsqrt.pop %v2628
    %v2631 = vmul.f32 %v2630, %v2628
    %v2632 = vmul.f32 %v2631, %v2630
    %v2633 = vmul.f32 0.5, %v2632
    %v2634 = vsub.f32 1.5, %v2633
    %v2635 = vmul.f32 %v2630, %v2634
    %vm2636 = vweird.f32 %v2628
    %vm2637 = vweird.f32 %v2630
    %vm2638 = vmor %vm2636, %vm2637
    %v2639 = vsel %vm2638, %v2630, %v2635
    %v2640 = vrsqrt.pop %v2629
    %v2641 = vmul.f32 %v2640, %v2629
    %v2642 = vmul.f32 %v2641, %v2640
    %v2643 = vmul.f32 0.5, %v2642
    %v2644 = vsub.f32 1.5, %v2643
    %v2645 = vmul.f32 %v2640, %v2644
    %vm2646 = vweird.f32 %v2629
    %vm2647 = vweird.f32 %v2640
    %vm2648 = vmor %vm2646, %vm2647
    %v2649 = vsel %vm2648, %v2640, %v2645
    %v2650 = vmul.f32 %v2626, %v2639
    %v2651 = vmul.f32 %v2627, %v2649
    %v2652 = vperm.slane %v79, 5
    %v2653 = vadd.f32 %v2650, %v2652
    %v2654 = vadd.f32 %v2651, %v2652
    %v2655 = vmax.f32 %v2653, 0.0
    %v2656 = vmax.f32 %v2654, 0.0
    %v2657 = vpack.c.bf16 %v2656, %v2655
    %s2658 = scalar_lea.vmem [#allocation8], 128
    %v2659 = vld [vmem:[%s2658] sm:$0xf]
    %v2660 = vld [vmem:[%s2658 + $0x4] sm:$0xf]
    %v2661 = vld [vmem:[%s2658 + $0x8] sm:$0xf]
    %v2662 = vld [vmem:[%s2658 + $0xc] sm:$0xf]
    %v2663 = vld [vmem:[%s2658 + $0x10] sm:$0xf]
    %v2664 = vld [vmem:[%s2658 + $0x14] sm:$0xf]
    %v2665 = vld [vmem:[%s2658 + $0x18] sm:$0xf]
    %v2666 = vld [vmem:[%s2658 + $0x1c] sm:$0xf]
    %v2667 = vld [vmem:[%s2658 + $0x20] sm:$0xf]
    %v2668 = vld [vmem:[%s2658 + $0x24] sm:$0xf]
    %v2669 = vld [vmem:[%s2658 + $0x28] sm:$0xf]
    %v2670 = vld [vmem:[%s2658 + $0x2c] sm:$0xf]
    %v2671 = vld [vmem:[%s2658 + $0x30] sm:$0xf]
    %v2672 = vld [vmem:[%s2658 + $0x34] sm:$0xf]
    %v2673 = vld [vmem:[%s2658 + $0x38] sm:$0xf]
    %v2674 = vld [vmem:[%s2658 + $0x3c] sm:$0xf]
    %v2691 = vunpack.c.l.b16 %v2659
    %v2692 = vunpack.c.l.b16 %v2660
    %v2693 = vunpack.c.l.b16 %v2661
    %v2694 = vunpack.c.l.b16 %v2662
    %v2695 = vunpack.c.l.b16 %v2663
    %v2696 = vunpack.c.l.b16 %v2664
    %v2697 = vunpack.c.l.b16 %v2665
    %v2698 = vunpack.c.l.b16 %v2666
    %v2699 = vunpack.c.l.b16 %v2667
    %v2700 = vunpack.c.l.b16 %v2668
    %v2701 = vunpack.c.l.b16 %v2669
    %v2702 = vunpack.c.l.b16 %v2670
    %v2703 = vunpack.c.l.b16 %v2671
    %v2704 = vunpack.c.l.b16 %v2672
    %v2705 = vunpack.c.l.b16 %v2673
    %v2706 = vunpack.c.l.b16 %v2674
    %v2707 = vpack.c.b16 %v2692, %v2691
    %v2708 = vpack.c.b16 %v2694, %v2693
    %v2709 = vpack.c.b16 %v2696, %v2695
    %v2710 = vpack.c.b16 %v2698, %v2697
    %v2711 = vpack.c.b16 %v2700, %v2699
    %v2712 = vpack.c.b16 %v2702, %v2701
    %v2713 = vpack.c.b16 %v2704, %v2703
    %v2714 = vpack.c.b16 %v2706, %v2705
    %2723 = vmatpush.bf16.msra.mxu0 %v2714
    %2724 = vmatpush.bf16.msra.mxu0 %v2713
    %2725 = vmatpush.bf16.msra.mxu0 %v2712
    %2726 = vmatpush.bf16.msra.mxu0 %v2711
    %2727 = vmatpush.bf16.msra.mxu0 %v2710
    %2728 = vmatpush.bf16.msra.mxu0 %v2709
    %2729 = vmatpush.bf16.msra.mxu0 %v2708
    %2730 = vmatpush.bf16.msra.mxu0 %v2707
    %2731 = vmatmul.bf16.gmra.mxu0 %v2657
    %v2732 = vpop.f32.mrf.mxu0
    %v2733 = vadd.f32 0.0, %v2732
    %v2734 = vpop.f32.mrf.mxu0
    %v2735 = vadd.f32 0.0, %v2734
    %2736 = vdwg.mxu0
    %v2737 = vrot.slane %v2733, 4
    %v2738 = vadd.f32 %v2733, %v2737
    %v2739 = vrot.slane %v2738, 2
    %v2740 = vadd.f32 %v2738, %v2739
    %v2741 = vrot.slane %v2740, 1
    %v2742 = vadd.f32 %v2740, %v2741
    %v2743 = vrot.slane %v2735, 4
    %v2744 = vadd.f32 %v2735, %v2743
    %v2745 = vrot.slane %v2744, 2
    %v2746 = vadd.f32 %v2744, %v2745
    %v2747 = vrot.slane %v2746, 1
    %v2748 = vadd.f32 %v2746, %v2747
    %v2749 = vmul.f32 %v2742, 0.125
    %v2750 = vmul.f32 %v2748, 0.125
    %v2751 = vmul.f32 %v2733, %v2733
    %v2752 = vmul.f32 %v2735, %v2735
    %v2753 = vrot.slane %v2751, 4
    %v2754 = vadd.f32 %v2751, %v2753
    %v2755 = vrot.slane %v2754, 2
    %v2756 = vadd.f32 %v2754, %v2755
    %v2757 = vrot.slane %v2756, 1
    %v2758 = vadd.f32 %v2756, %v2757
    %v2759 = vrot.slane %v2752, 4
    %v2760 = vadd.f32 %v2752, %v2759
    %v2761 = vrot.slane %v2760, 2
    %v2762 = vadd.f32 %v2760, %v2761
    %v2763 = vrot.slane %v2762, 1
    %v2764 = vadd.f32 %v2762, %v2763
    %v2765 = vmul.f32 %v2758, 0.125
    %v2766 = vmul.f32 %v2764, 0.125
    %v2767 = vmul.f32 %v2749, %v2749
    %v2768 = vmul.f32 %v2750, %v2750
    %v2769 = vsub.f32 %v2765, %v2767
    %v2770 = vsub.f32 %v2766, %v2768
    %v2771 = vsub.f32 %v2733, %v2749
    %v2772 = vsub.f32 %v2735, %v2750
    %v2773 = vadd.f32 %v2769, 1e-05
    %v2774 = vadd.f32 %v2770, 1e-05
    %v2775 = vrsqrt.pop %v2773
    %v2776 = vmul.f32 %v2775, %v2773
    %v2777 = vmul.f32 %v2776, %v2775
    %v2778 = vmul.f32 0.5, %v2777
    %v2779 = vsub.f32 1.5, %v2778
    %v2780 = vmul.f32 %v2775, %v2779
    %vm2781 = vweird.f32 %v2773
    %vm2782 = vweird.f32 %v2775
    %vm2783 = vmor %vm2781, %vm2782
    %v2784 = vsel %vm2783, %v2775, %v2780
    %v2785 = vrsqrt.pop %v2774
    %v2786 = vmul.f32 %v2785, %v2774
    %v2787 = vmul.f32 %v2786, %v2785
    %v2788 = vmul.f32 0.5, %v2787
    %v2789 = vsub.f32 1.5, %v2788
    %v2790 = vmul.f32 %v2785, %v2789
    %vm2791 = vweird.f32 %v2774
    %vm2792 = vweird.f32 %v2785
    %vm2793 = vmor %vm2791, %vm2792
    %v2794 = vsel %vm2793, %v2785, %v2790
    %v2795 = vmul.f32 %v2771, %v2784
    %v2796 = vmul.f32 %v2772, %v2794
    %2797 = vxpose.xlu0.b32.start [1/16] %v2795, 128
    %2798 = vxpose.xlu0.b32.cont [2/16] 0.0, 128
    %2799 = vxpose.xlu0.b32.cont [3/16] 0.0, 128
    %2800 = vxpose.xlu0.b32.cont [4/16] 0.0, 128
    %2801 = vxpose.xlu0.b32.cont [5/16] 0.0, 128
    %2802 = vxpose.xlu0.b32.cont [6/16] 0.0, 128
    %2803 = vxpose.xlu0.b32.cont [7/16] 0.0, 128
    %2804 = vxpose.xlu0.b32.cont [8/16] 0.0, 128
    %2805 = vxpose.xlu0.b32.cont [9/16] 0.0, 128
    %2806 = vxpose.xlu0.b32.cont [10/16] 0.0, 128
    %2807 = vxpose.xlu0.b32.cont [11/16] 0.0, 128
    %2808 = vxpose.xlu0.b32.cont [12/16] 0.0, 128
    %2809 = vxpose.xlu0.b32.cont [13/16] 0.0, 128
    %2810 = vxpose.xlu0.b32.cont [14/16] 0.0, 128
    %2811 = vxpose.xlu0.b32.cont [15/16] 0.0, 128
    %2812 = vxpose.xlu0.b32.end [16/16] 0.0, 128
    %v2813 = vpop.trf.xlu0
    %v2814 = vpop.trf.xlu0
    %v2815 = vpop.trf.xlu0
    %v2816 = vpop.trf.xlu0
    %v2817 = vpop.trf.xlu0
    %v2818 = vpop.trf.xlu0
    %v2819 = vpop.trf.xlu0
    %v2820 = vpop.trf.xlu0
    %v2821 = vpop.trf.xlu0
    %v2822 = vpop.trf.xlu0
    %v2823 = vpop.trf.xlu0
    %v2824 = vpop.trf.xlu0
    %v2825 = vpop.trf.xlu0
    %v2826 = vpop.trf.xlu0
    %v2827 = vpop.trf.xlu0
    %v2828 = vpop.trf.xlu0
    %vm2829 = vcmask 64512
    %v2831 = vsel %vm2829, %v2813, 0
    %v2834 = vsel %vm2829, %v2814, 0
    %v2837 = vsel %vm2829, %v2815, 0
    %v2840 = vsel %vm2829, %v2816, 0
    %v2843 = vsel %vm2829, %v2817, 0
    %v2846 = vsel %vm2829, %v2818, 0
    %v2849 = vsel %vm2829, %v2819, 0
    %v2852 = vsel %vm2829, %v2820, 0
    %v2855 = vsel %vm2829, %v2821, 0
    %v2858 = vsel %vm2829, %v2822, 0
    %v2861 = vsel %vm2829, %v2823, 0
    %v2864 = vsel %vm2829, %v2824, 0
    %v2867 = vsel %vm2829, %v2825, 0
    %v2870 = vsel %vm2829, %v2826, 0
    %v2873 = vsel %vm2829, %v2827, 0
    %v2876 = vsel %vm2829, %v2828, 0
    %2878 = vmatpush.msra.mxu0 0.0
    %2879 = vmatpush.msra.mxu0 0.0
    %2880 = vmatpush.msra.mxu0 0.0
    %2881 = vmatpush.msra.mxu0 0.0
    %2882 = vmatpush.msra.mxu0 0.0
    %2883 = vmatpush.msra.mxu0 0.0
    %2884 = vmatpush.msra.mxu0 0.0
    %2885 = vmatpush.msra.mxu0 0.0
    %2886 = vmatpush.msra.mxu0 0.0
    %2887 = vmatpush.msra.mxu0 0.0
    %2888 = vmatpush.msra.mxu0 0.0
    %2889 = vmatpush.msra.mxu0 0.0
    %2890 = vmatpush.msra.mxu0 0.0
    %2891 = vmatpush.msra.mxu0 0.0
    %2892 = vmatpush.msra.mxu0 0.0
    %2893 = vmatpush.msra.mxu0 %v2796
    %2894 = vmatmul.f32.gmra.mxu0 %v2831
    %v2895 = vpop.f32.mrf.mxu0
    %v2896 = vadd.f32 0.0, %v2895
    %2897 = vmatmul.f32.gmra.mxu0 %v2834
    %v2898 = vpop.f32.mrf.mxu0
    %v2899 = vadd.f32 0.0, %v2898
    %2900 = vmatmul.f32.gmra.mxu0 %v2837
    %v2901 = vpop.f32.mrf.mxu0
    %v2902 = vadd.f32 0.0, %v2901
    %2903 = vmatmul.f32.gmra.mxu0 %v2840
    %v2904 = vpop.f32.mrf.mxu0
    %v2905 = vadd.f32 0.0, %v2904
    %2906 = vmatmul.f32.gmra.mxu0 %v2843
    %v2907 = vpop.f32.mrf.mxu0
    %v2908 = vadd.f32 0.0, %v2907
    %2909 = vmatmul.f32.gmra.mxu0 %v2846
    %v2910 = vpop.f32.mrf.mxu0
    %v2911 = vadd.f32 0.0, %v2910
    %2912 = vmatmul.f32.gmra.mxu0 %v2849
    %v2913 = vpop.f32.mrf.mxu0
    %v2914 = vadd.f32 0.0, %v2913
    %2915 = vmatmul.f32.gmra.mxu0 %v2852
    %v2916 = vpop.f32.mrf.mxu0
    %v2917 = vadd.f32 0.0, %v2916
    %2918 = vmatmul.f32.gmra.mxu0 %v2855
    %v2919 = vpop.f32.mrf.mxu0
    %v2920 = vadd.f32 0.0, %v2919
    %2921 = vmatmul.f32.gmra.mxu0 %v2858
    %v2922 = vpop.f32.mrf.mxu0
    %v2923 = vadd.f32 0.0, %v2922
    %2924 = vmatmul.f32.gmra.mxu0 %v2861
    %v2925 = vpop.f32.mrf.mxu0
    %v2926 = vadd.f32 0.0, %v2925
    %2927 = vmatmul.f32.gmra.mxu0 %v2864
    %v2928 = vpop.f32.mrf.mxu0
    %v2929 = vadd.f32 0.0, %v2928
    %2930 = vmatmul.f32.gmra.mxu0 %v2867
    %v2931 = vpop.f32.mrf.mxu0
    %v2932 = vadd.f32 0.0, %v2931
    %2933 = vmatmul.f32.gmra.mxu0 %v2870
    %v2934 = vpop.f32.mrf.mxu0
    %v2935 = vadd.f32 0.0, %v2934
    %2936 = vmatmul.f32.gmra.mxu0 %v2873
    %v2937 = vpop.f32.mrf.mxu0
    %v2938 = vadd.f32 0.0, %v2937
    %2939 = vmatmul.f32.gmra.mxu0 %v2876
    %v2940 = vpop.f32.mrf.mxu0
    %v2941 = vadd.f32 0.0, %v2940
    %2942 = vdwg.mxu0
    %v2943 = vmul.f32 %v2896, 0.125
    %v2944 = vmul.f32 %v2899, 0.125
    %v2945 = vmul.f32 %v2902, 0.125
    %v2946 = vmul.f32 %v2905, 0.125
    %v2947 = vmul.f32 %v2908, 0.125
    %v2948 = vmul.f32 %v2911, 0.125
    %v2949 = vmul.f32 %v2914, 0.125
    %v2950 = vmul.f32 %v2917, 0.125
    %v2951 = vmul.f32 %v2920, 0.125
    %v2952 = vmul.f32 %v2923, 0.125
    %v2953 = vmul.f32 %v2926, 0.125
    %v2954 = vmul.f32 %v2929, 0.125
    %v2955 = vmul.f32 %v2932, 0.125
    %v2956 = vmul.f32 %v2935, 0.125
    %v2957 = vmul.f32 %v2938, 0.125
    %v2958 = vmul.f32 %v2941, 0.125
    %v2959 = vlaneseq
    %v2960 = vshrl.u32 %v2959, 7
    %v2961 = vadd.s32 %v2960, 8
    %v2962 = vadd.s32 %v2960, 16
    %v2963 = vadd.s32 %v2960, 24
    %v2964 = vadd.s32 %v2960, 32
    %v2965 = vadd.s32 %v2960, 40
    %v2966 = vadd.s32 %v2960, 48
    %v2967 = vadd.s32 %v2960, 56
    %v2968 = vadd.s32 %v2960, 64
    %v2969 = vadd.s32 %v2960, 72
    %v2970 = vadd.s32 %v2960, 80
    %v2971 = vadd.s32 %v2960, 88
    %v2972 = vadd.s32 %v2960, 96
    %v2973 = vadd.s32 %v2960, 104
    %v2974 = vadd.s32 %v2960, 112
    %v2975 = vadd.s32 %v2960, 120
    %v2976 = vlaneseq
    %v2977 = vand.u32 %v2976, 127
    %vm2978 = vcmp.eq.s32.totalorder %v2960, %v2977
    %vm2979 = vcmp.eq.s32.totalorder %v2961, %v2977
    %vm2980 = vcmp.eq.s32.totalorder %v2962, %v2977
    %vm2981 = vcmp.eq.s32.totalorder %v2963, %v2977
    %vm2982 = vcmp.eq.s32.totalorder %v2964, %v2977
    %vm2983 = vcmp.eq.s32.totalorder %v2965, %v2977
    %vm2984 = vcmp.eq.s32.totalorder %v2966, %v2977
    %vm2985 = vcmp.eq.s32.totalorder %v2967, %v2977
    %vm2986 = vcmp.eq.s32.totalorder %v2968, %v2977
    %vm2987 = vcmp.eq.s32.totalorder %v2969, %v2977
    %vm2988 = vcmp.eq.s32.totalorder %v2970, %v2977
    %vm2989 = vcmp.eq.s32.totalorder %v2971, %v2977
    %vm2990 = vcmp.eq.s32.totalorder %v2972, %v2977
    %vm2991 = vcmp.eq.s32.totalorder %v2973, %v2977
    %vm2992 = vcmp.eq.s32.totalorder %v2974, %v2977
    %vm2993 = vcmp.eq.s32.totalorder %v2975, %v2977
    %v2994 = vsel %vm2978, %v2943, 0.0
    %v2995 = vsel %vm2979, %v2944, 0.0
    %v2996 = vsel %vm2980, %v2945, 0.0
    %v2997 = vsel %vm2981, %v2946, 0.0
    %v2998 = vsel %vm2982, %v2947, 0.0
    %v2999 = vsel %vm2983, %v2948, 0.0
    %v3000 = vsel %vm2984, %v2949, 0.0
    %v3001 = vsel %vm2985, %v2950, 0.0
    %v3002 = vsel %vm2986, %v2951, 0.0
    %v3003 = vsel %vm2987, %v2952, 0.0
    %v3004 = vsel %vm2988, %v2953, 0.0
    %v3005 = vsel %vm2989, %v2954, 0.0
    %v3006 = vsel %vm2990, %v2955, 0.0
    %v3007 = vsel %vm2991, %v2956, 0.0
    %v3008 = vsel %vm2992, %v2957, 0.0
    %v3009 = vsel %vm2993, %v2958, 0.0
    %v3010 = vadd.f32 %v2994, %v2995
    %v3011 = vadd.f32 %v3010, %v2996
    %v3012 = vadd.f32 %v3011, %v2997
    %v3013 = vadd.f32 %v3012, %v2998
    %v3014 = vadd.f32 %v3013, %v2999
    %v3015 = vadd.f32 %v3014, %v3000
    %v3016 = vadd.f32 %v3015, %v3001
    %v3017 = vadd.f32 %v3016, %v3002
    %v3018 = vadd.f32 %v3017, %v3003
    %v3019 = vadd.f32 %v3018, %v3004
    %v3020 = vadd.f32 %v3019, %v3005
    %v3021 = vadd.f32 %v3020, %v3006
    %v3022 = vadd.f32 %v3021, %v3007
    %v3023 = vadd.f32 %v3022, %v3008
    %v3024 = vadd.f32 %v3023, %v3009
    %v3025 = vrot.slane %v3024, 4
    %v3026 = vadd.f32 %v3024, %v3025
    %v3027 = vrot.slane %v3026, 2
    %v3028 = vadd.f32 %v3026, %v3027
    %v3029 = vrot.slane %v3028, 1
    %v3030 = vadd.f32 %v3028, %v3029
    %vm3031 = vcmp.lt.s32.totalorder %v2977, 32
    %v3032 = vsub.f32 %v3030, 1.0
    %v3033 = vmul.f32 %v3032, %v3032
    %v3034 = vsel %vm3031, %v3033, 0.0
    %vm3035 = vcmask 1040384
    %v3036 = vsel %vm3035, %v3034, 0.0
    %3037 = vadd.xlane.f32.xlu0 %v3036
    %v3038 = vpop.xlane.xlu0 %3037
    %v3039 = vrot.slane %v3038, 4
    %v3040 = vadd.f32 %v3038, %v3039
    %v3041 = vrot.slane %v3040, 2
    %v3042 = vadd.f32 %v3040, %v3041
    %v3043 = vrot.slane %v3042, 1
    %v3044 = vadd.f32 %v3042, %v3043
    %s3045 = vtos %v3044
    %v3046 = vmul.f32 %v2943, %v2943
    %v3047 = vmul.f32 %v2944, %v2944
    %v3048 = vmul.f32 %v2945, %v2945
    %v3049 = vmul.f32 %v2946, %v2946
    %v3050 = vmul.f32 %v2947, %v2947
    %v3051 = vmul.f32 %v2948, %v2948
    %v3052 = vmul.f32 %v2949, %v2949
    %v3053 = vmul.f32 %v2950, %v2950
    %v3054 = vmul.f32 %v2951, %v2951
    %v3055 = vmul.f32 %v2952, %v2952
    %v3056 = vmul.f32 %v2953, %v2953
    %v3057 = vmul.f32 %v2954, %v2954
    %v3058 = vmul.f32 %v2955, %v2955
    %v3059 = vmul.f32 %v2956, %v2956
    %v3060 = vmul.f32 %v2957, %v2957
    %v3061 = vmul.f32 %v2958, %v2958
    %v3062 = vadd.f32 %v3046, %v3047
    %v3063 = vadd.f32 %v3062, %v3048
    %v3064 = vadd.f32 %v3063, %v3049
    %v3065 = vadd.f32 %v3064, %v3050
    %v3066 = vadd.f32 %v3065, %v3051
    %v3067 = vadd.f32 %v3066, %v3052
    %v3068 = vadd.f32 %v3067, %v3053
    %v3069 = vadd.f32 %v3068, %v3054
    %v3070 = vadd.f32 %v3069, %v3055
    %v3071 = vadd.f32 %v3070, %v3056
    %v3072 = vadd.f32 %v3071, %v3057
    %v3073 = vadd.f32 %v3072, %v3058
    %v3074 = vadd.f32 %v3073, %v3059
    %v3075 = vadd.f32 %v3074, %v3060
    %v3076 = vadd.f32 %v3075, %v3061
    %3077 = vadd.xlane.f32.xlu0 %v3076
    %v3078 = vpop.xlane.xlu0 %3077
    %v3079 = vrot.slane %v3078, 4
    %v3080 = vadd.f32 %v3078, %v3079
    %v3081 = vrot.slane %v3080, 2
    %v3082 = vadd.f32 %v3080, %v3081
    %v3083 = vrot.slane %v3082, 1
    %v3084 = vadd.f32 %v3082, %v3083
    %s3085 = vtos %v3084
    %v3086 = vmul.f32 %v3030, %v3030
    %v3087 = vsel %vm3035, %v3086, 0.0
    %3088 = vadd.xlane.f32.xlu0 %v3087
    %v3089 = vpop.xlane.xlu0 %3088
    %v3090 = vrot.slane %v3089, 4
    %v3091 = vadd.f32 %v3089, %v3090
    %v3092 = vrot.slane %v3091, 2
    %v3093 = vadd.f32 %v3091, %v3092
    %v3094 = vrot.slane %v3093, 1
    %v3095 = vadd.f32 %v3093, %v3094
    %s3096 = vtos %v3095
    %s3097 = ssub.f32 %s3085, %s3096
    %s3098 = smul.f32 %s3097, 0.0051
    %s3099 = sadd.f32 %s3045, %s3098
    %s3100 = scalar_lea.smem [#allocation10], 0
    %3101 = sst [smem:[%s3100]] %s3099
    // Predicated region
    $region34: #{tpu_custom_call.1} parent=1 // pred_check
      _
    $region35: #{tpu_custom_call.1} parent=1 // pred_check_branch
      %3103 = sbr.rel (0) target = $region37
    $region36: #{tpu_custom_call.1} parent=1 // pred_region
      %3105 = vsyncadd [#allocation4], 0
      %s3107 = sshll.u32 %s4, 4
      %s3108 = int_to_ptr.hbm [resolvable:$true] %s3107
      %3110 = dma.smem_to_hbm [#allocation10], 16, %s3108, [#allocation4]
    $region37: #{tpu_custom_call.1} parent=1 // pred_fallthru
      _
    // Predicated region
    $region38: #{tpu_custom_call.1} parent=1 // pred_check
      _
    $region39: #{tpu_custom_call.1} parent=1 // pred_check_branch
      %3112 = sbr.rel (0) target = $region41
    $region40: #{tpu_custom_call.1} parent=1 // pred_region
      %3114 = dma.done [#allocation4], 16
    $region41: #{tpu_custom_call.1} parent=1 // pred_fallthru
      _
    %3115 = sfence
    %3116 = vsyncpa [#allocation3], 1
    %3117 = vsyncpa [#allocation6], 1
    %3118 = vsyncpa [#allocation9], 1
    %3119 = vsyncpa [#allocation4], 1

</llo_original>
